<compile_context>
chip_gen: v7x
topology: tpu7x:2x2x1
jax: 0.10.0
libtpu: 0.0.40
codegen_flags: <defaults>
</compile_context>

<pallas_src>
import functools

import jax
import jax.numpy as jnp
from jax.experimental import pallas as pl
from jax.experimental.pallas import tpu as pltpu

# ---------------- module hyper-parameters -----------------------------------
MODE = "idr"               # concat [points, view_dirs, normals, feature_vectors]
D_IN = 9                   # 3 (points) + 3 (view_dirs) + 3 (normals)
FEATURE_SIZE = 16
LATENT_SIZE = 8
HIDDEN_DIMS = [64, 64]
D_OUT = 3
MULTIRES_VIEW = 0          # no positional embedding of view dirs
WEIGHT_NORM = True

# ---------------- kernel geometry --------------------------------------------
RAW_IN = D_IN + FEATURE_SIZE + LATENT_SIZE   # 33 real input channels
GEO = 3                                      # width of each geometric group
GEO_PAD = 8                                  # geometric weights stored 8-row padded
HID = HIDDEN_DIMS[0]                         # 64
OUT_PAD = 8                                  # layer-2 weight padded to 8 columns
TM_MAX = 1024                                # max rows (points) per grid tile


def _round_up(x, m):
    return ((x + m - 1) // m) * m


# ---------------- Pallas kernel ----------------------------------------------
def _rendering_mlp_kernel(p_ref, v_ref, n_ref, f_ref, c0_ref,
                          w0p_ref, w0v_ref, w0n_ref, w0f_ref,
                          w1_ref, b1_ref, w2_ref, b2_ref, o_ref):
    """tanh( relu( relu(x @ W0 + b0) @ W1 + b1 ) @ W2 + b2 ) where the input
    concat [points, view_dirs, normals, features, latent] is fused away."""
    f32 = jnp.float32
    dot = lambda a, b: jnp.dot(a, b, preferred_element_type=f32)

    # ---- layer 0: one small MXU dot per input group; latent + bias is the
    # precomputed (1, HID) row c0, broadcast over the tile's rows. ----
    h = (dot(p_ref[...], w0p_ref[...][:GEO, :])
         + dot(v_ref[...], w0v_ref[...][:GEO, :])
         + dot(n_ref[...], w0n_ref[...][:GEO, :])
         + dot(f_ref[...], w0f_ref[...])
         + c0_ref[...])                               # (tm, HID)
    h = jnp.maximum(h, 0.0)

    # ---- layer 1 ----
    h = jnp.maximum(dot(h, w1_ref[...]) + b1_ref[...], 0.0)

    # ---- layer 2 (+ tanh); W2/b2 are zero-padded to 8 output columns ----
    h = dot(h, w2_ref[...]) + b2_ref[...]             # (tm, OUT_PAD)
    o_ref[...] = jnp.tanh(h[:, :D_OUT])               # lane-exact (tm, 3) store


@functools.partial(jax.jit, static_argnames=("tm",))
def _run_mlp(points, view_dirs, normals, feats, latent,
             w0p, w0v, w0n, w0f, w0_lat, b0, w1, b1, w2, b2, *, tm):
    f32 = jnp.float32
    points = points.astype(f32)
    view_dirs = view_dirs.astype(f32)
    normals = normals.astype(f32)
    feats = feats.astype(f32)

    # Latent code is shared by all rows: its layer-0 contribution plus the bias
    # collapses to a single (1, HID) row computed once outside the kernel.
    c0 = latent.astype(f32) @ w0_lat + b0[None, :]

    n = points.shape[0]
    grid = (pl.cdiv(n, tm),)
    row = lambda i: (i, 0)
    const = lambda i: (0, 0)     # weights: fetched once, VMEM-resident

    return pl.pallas_call(
        _rendering_mlp_kernel,
        out_shape=jax.ShapeDtypeStruct((n, D_OUT), jnp.float32),
        grid_spec=pltpu.PrefetchScalarGridSpec(
            num_scalar_prefetch=0,
            grid=grid,
            in_specs=[
                pl.BlockSpec((tm, GEO), row),             # points
                pl.BlockSpec((tm, GEO), row),             # view_dirs
                pl.BlockSpec((tm, GEO), row),             # normals
                pl.BlockSpec((tm, FEATURE_SIZE), row),    # feature_vectors
                pl.BlockSpec((1, HID), const),            # c0 = latent@W0_lat + b0
                pl.BlockSpec((GEO_PAD, HID), const),      # W0_points  (zero-padded rows)
                pl.BlockSpec((GEO_PAD, HID), const),      # W0_viewdir (zero-padded rows)
                pl.BlockSpec((GEO_PAD, HID), const),      # W0_normals (zero-padded rows)
                pl.BlockSpec((FEATURE_SIZE, HID), const), # W0_features
                pl.BlockSpec((HID, HID), const),          # W1
                pl.BlockSpec((1, HID), const),            # b1
                pl.BlockSpec((HID, OUT_PAD), const),      # W2 (zero-padded cols)
                pl.BlockSpec((1, OUT_PAD), const),        # b2 (zero-padded cols)
            ],
            out_specs=pl.BlockSpec((tm, D_OUT), row),
        ),
        compiler_params=pltpu.CompilerParams(
            dimension_semantics=("parallel",)),
    )(points, view_dirs, normals, feats, c0,
      w0p, w0v, w0n, w0f, w1, b1, w2, b2)


# ---------------- parameter construction (deterministic, in-script) ----------
def _init_linear(key, fan_in, fan_out):
    """PyTorch nn.Linear init + weight_norm(dim=0) with g = ||v|| (identity at init)."""
    kw, kb = jax.random.split(key)
    bound = 1.0 / jnp.sqrt(jnp.float32(fan_in))
    v = jax.random.uniform(kw, (fan_out, fan_in), jnp.float32, -bound, bound)
    b = jax.random.uniform(kb, (fan_out,), jnp.float32, -bound, bound)
    if WEIGHT_NORM:
        norm = jnp.linalg.norm(v, axis=1, keepdims=True)
        w_eff = norm * v / norm          # g initialised to ||v|| -> identity at init
    else:
        w_eff = v
    return w_eff.T, b                    # (in, out), (out,)


class RenderingNetworkPallas:
    def __init__(self, key):
        dims = [RAW_IN] + HIDDEN_DIMS + [D_OUT]
        assert len(dims) == 4, "kernel is written for 3 linear layers"
        assert MODE == "idr" and MULTIRES_VIEW == 0
        keys = jax.random.split(key, len(dims) - 1)
        self.raw_params = [
            _init_linear(keys[l], dims[l], dims[l + 1]) for l in range(len(dims) - 1)
        ]
        (w0, b0), (w1, b1), (w2, b2) = self.raw_params

        # Split layer 0 along the concat boundaries of
        #   x = [points(0:3), view_dirs(3:6), normals(6:9), features(9:25), latent(25:33)].
        def pad_geo(rows):                      # (3, HID) -> (8, HID), zero rows 3..7
            return jnp.zeros((GEO_PAD, HID), jnp.float32).at[:GEO].set(rows)

        self.w0_p = pad_geo(w0[0:3])
        self.w0_v = pad_geo(w0[3:6])
        self.w0_n = pad_geo(w0[6:9])
        self.w0_f = w0[9:9 + FEATURE_SIZE]                      # (16, HID)
        self.w0_lat = w0[9 + FEATURE_SIZE:]                     # (8, HID)
        self.b0 = b0                                            # (HID,)

        self.w1 = w1                                            # (HID, HID)
        self.b1 = b1.reshape(1, HID)

        self.w2 = jnp.zeros((HID, OUT_PAD), jnp.float32).at[:, :D_OUT].set(w2)
        self.b2 = jnp.zeros((1, OUT_PAD), jnp.float32).at[0, :D_OUT].set(b2)

    def __call__(self, points, normals, view_dirs, feature_vectors, latent_code):
        n = points.shape[0]
        tm = min(TM_MAX, _round_up(max(n, 8), 8))
        return _run_mlp(points, view_dirs, normals, feature_vectors, latent_code,
                        self.w0_p, self.w0_v, self.w0_n, self.w0_f,
                        self.w0_lat, self.b0, self.w1, self.b1, self.w2, self.b2,
                        tm=tm)


# ---------------- reference (pure JAX) for sanity -----------------------------
def _reference_f32(net, points, normals, view_dirs, feature_vectors, latent_code):
    """Exact forward of the original module semantics."""
    x = jnp.concatenate([points, view_dirs, normals, feature_vectors], axis=-1)
    code = jnp.broadcast_to(latent_code, (x.shape[0], latent_code.shape[1]))
    x = jnp.concatenate([x, code], axis=1).astype(jnp.float32)
    for l, (w, b) in enumerate(net.raw_params):
        x = x @ w + b
        if l < len(net.raw_params) - 1:
            x = jnp.maximum(x, 0.0)
    return jnp.tanh(x)


if __name__ == "__main__":
    key = jax.random.PRNGKey(0)
    k_param, k_p, k_n, k_v, k_f, k_l = jax.random.split(key, 6)

    N = 256  # number of surface points
    points = jax.random.normal(k_p, (N, 3), jnp.float32)
    normals = jax.random.normal(k_n, (N, 3), jnp.float32)
    view_dirs = jax.random.normal(k_v, (N, 3), jnp.float32)
    feature_vectors = jax.random.normal(k_f, (N, FEATURE_SIZE), jnp.float32)
    latent_code = jax.random.normal(k_l, (1, LATENT_SIZE), jnp.float32)

    net = RenderingNetworkPallas(k_param)
    out = net(points, normals, view_dirs, feature_vectors, latent_code)
    out = jax.block_until_ready(out)
    assert out.shape == (N, D_OUT), out.shape

    ref = _reference_f32(net, points, normals, view_dirs, feature_vectors, latent_code)
    err = float(jnp.max(jnp.abs(out - ref)))
    assert err < 2e-2, err

    print("KERNEL_OK")
</pallas_src>

<mosaic_0001>
module attributes {stable_mosaic.version = 11 : i64} {
  func.func @_rendering_mlp_kernel(%arg0: i32, %arg1: memref<256x3xf32, #tpu.memory_space<vmem>>, %arg2: memref<256x3xf32, #tpu.memory_space<vmem>>, %arg3: memref<256x3xf32, #tpu.memory_space<vmem>>, %arg4: memref<256x16xf32, #tpu.memory_space<vmem>>, %arg5: memref<1x64xf32, #tpu.memory_space<vmem>>, %arg6: memref<8x64xf32, #tpu.memory_space<vmem>>, %arg7: memref<8x64xf32, #tpu.memory_space<vmem>>, %arg8: memref<8x64xf32, #tpu.memory_space<vmem>>, %arg9: memref<16x64xf32, #tpu.memory_space<vmem>>, %arg10: memref<64x64xf32, #tpu.memory_space<vmem>>, %arg11: memref<1x64xf32, #tpu.memory_space<vmem>>, %arg12: memref<64x8xf32, #tpu.memory_space<vmem>>, %arg13: memref<1x8xf32, #tpu.memory_space<vmem>>, %arg14: memref<256x3xf32, #tpu.memory_space<vmem>>) attributes {dimension_semantics = [#tpu.dimension_semantics<parallel>], iteration_bounds = array<i64: 1>, scalar_prefetch = 0 : i64, scratch_operands = 0 : i64, tpu.core_type = #tpu.core_type<tc>, window_params = [{transform_indices = @transform_0, window_bounds = array<i64: 256, 3>}, {transform_indices = @transform_1, window_bounds = array<i64: 256, 3>}, {transform_indices = @transform_2, window_bounds = array<i64: 256, 3>}, {transform_indices = @transform_3, window_bounds = array<i64: 256, 16>}, {pipeline_mode = #tpu.pipeline_mode<synchronous>, transform_indices = @transform_4, window_bounds = array<i64: 1, 64>}, {pipeline_mode = #tpu.pipeline_mode<synchronous>, transform_indices = @transform_5, window_bounds = array<i64: 8, 64>}, {pipeline_mode = #tpu.pipeline_mode<synchronous>, transform_indices = @transform_6, window_bounds = array<i64: 8, 64>}, {pipeline_mode = #tpu.pipeline_mode<synchronous>, transform_indices = @transform_7, window_bounds = array<i64: 8, 64>}, {pipeline_mode = #tpu.pipeline_mode<synchronous>, transform_indices = @transform_8, window_bounds = array<i64: 16, 64>}, {pipeline_mode = #tpu.pipeline_mode<synchronous>, transform_indices = @transform_9, window_bounds = array<i64: 64, 64>}, {pipeline_mode = #tpu.pipeline_mode<synchronous>, transform_indices = @transform_10, window_bounds = array<i64: 1, 64>}, {pipeline_mode = #tpu.pipeline_mode<synchronous>, transform_indices = @transform_11, window_bounds = array<i64: 64, 8>}, {pipeline_mode = #tpu.pipeline_mode<synchronous>, transform_indices = @transform_12, window_bounds = array<i64: 1, 8>}, {transform_indices = @transform_13, window_bounds = array<i64: 256, 3>}]} {
    %c0 = arith.constant 0 : index
    %c0_0 = arith.constant 0 : index
    %0 = vector.load %arg1[%c0, %c0_0] : memref<256x3xf32, #tpu.memory_space<vmem>>, vector<256x3xf32>
    %c0_1 = arith.constant 0 : index
    %c0_2 = arith.constant 0 : index
    %1 = vector.load %arg6[%c0_1, %c0_2] : memref<8x64xf32, #tpu.memory_space<vmem>>, vector<8x64xf32>
    %2 = vector.extract_strided_slice %1 {offsets = [0, 0], sizes = [3, 64], strides = [1, 1]} : vector<8x64xf32> to vector<3x64xf32>
    %cst = arith.constant dense<0.000000e+00> : vector<256x64xf32>
    %3 = tpu.matmul %0, %2, %cst {dimension_numbers = #tpu.dot_dimension_numbers<[1], [0], [0], [1], [0, 0, 1, 1], [], []>} : vector<256x3xf32>, vector<3x64xf32>, vector<256x64xf32> -> vector<256x64xf32>
    %c0_3 = arith.constant 0 : index
    %c0_4 = arith.constant 0 : index
    %4 = vector.load %arg2[%c0_3, %c0_4] : memref<256x3xf32, #tpu.memory_space<vmem>>, vector<256x3xf32>
    %c0_5 = arith.constant 0 : index
    %c0_6 = arith.constant 0 : index
    %5 = vector.load %arg7[%c0_5, %c0_6] : memref<8x64xf32, #tpu.memory_space<vmem>>, vector<8x64xf32>
    %6 = vector.extract_strided_slice %5 {offsets = [0, 0], sizes = [3, 64], strides = [1, 1]} : vector<8x64xf32> to vector<3x64xf32>
    %cst_7 = arith.constant dense<0.000000e+00> : vector<256x64xf32>
    %7 = tpu.matmul %4, %6, %cst_7 {dimension_numbers = #tpu.dot_dimension_numbers<[1], [0], [0], [1], [0, 0, 1, 1], [], []>} : vector<256x3xf32>, vector<3x64xf32>, vector<256x64xf32> -> vector<256x64xf32>
    %8 = arith.addf %3, %7 : vector<256x64xf32>
    %c0_8 = arith.constant 0 : index
    %c0_9 = arith.constant 0 : index
    %9 = vector.load %arg3[%c0_8, %c0_9] : memref<256x3xf32, #tpu.memory_space<vmem>>, vector<256x3xf32>
    %c0_10 = arith.constant 0 : index
    %c0_11 = arith.constant 0 : index
    %10 = vector.load %arg8[%c0_10, %c0_11] : memref<8x64xf32, #tpu.memory_space<vmem>>, vector<8x64xf32>
    %11 = vector.extract_strided_slice %10 {offsets = [0, 0], sizes = [3, 64], strides = [1, 1]} : vector<8x64xf32> to vector<3x64xf32>
    %cst_12 = arith.constant dense<0.000000e+00> : vector<256x64xf32>
    %12 = tpu.matmul %9, %11, %cst_12 {dimension_numbers = #tpu.dot_dimension_numbers<[1], [0], [0], [1], [0, 0, 1, 1], [], []>} : vector<256x3xf32>, vector<3x64xf32>, vector<256x64xf32> -> vector<256x64xf32>
    %13 = arith.addf %8, %12 : vector<256x64xf32>
    %c0_13 = arith.constant 0 : index
    %c0_14 = arith.constant 0 : index
    %14 = vector.load %arg4[%c0_13, %c0_14] : memref<256x16xf32, #tpu.memory_space<vmem>>, vector<256x16xf32>
    %c0_15 = arith.constant 0 : index
    %c0_16 = arith.constant 0 : index
    %15 = vector.load %arg9[%c0_15, %c0_16] : memref<16x64xf32, #tpu.memory_space<vmem>>, vector<16x64xf32>
    %cst_17 = arith.constant dense<0.000000e+00> : vector<256x64xf32>
    %16 = tpu.matmul %14, %15, %cst_17 {dimension_numbers = #tpu.dot_dimension_numbers<[1], [0], [0], [1], [0, 0, 1, 1], [], []>} : vector<256x16xf32>, vector<16x64xf32>, vector<256x64xf32> -> vector<256x64xf32>
    %17 = arith.addf %13, %16 : vector<256x64xf32>
    %c0_18 = arith.constant 0 : index
    %c0_19 = arith.constant 0 : index
    %18 = vector.load %arg5[%c0_18, %c0_19] : memref<1x64xf32, #tpu.memory_space<vmem>>, vector<1x64xf32>
    %19 = vector.broadcast %18 : vector<1x64xf32> to vector<256x64xf32>
    %20 = arith.addf %17, %19 : vector<256x64xf32>
    %cst_20 = arith.constant 0.000000e+00 : f32
    %21 = vector.broadcast %cst_20 : f32 to vector<256x64xf32>
    %22 = arith.maximumf %20, %21 : vector<256x64xf32>
    %c0_21 = arith.constant 0 : index
    %c0_22 = arith.constant 0 : index
    %23 = vector.load %arg10[%c0_21, %c0_22] : memref<64x64xf32, #tpu.memory_space<vmem>>, vector<64x64xf32>
    %cst_23 = arith.constant dense<0.000000e+00> : vector<256x64xf32>
    %24 = tpu.matmul %22, %23, %cst_23 {dimension_numbers = #tpu.dot_dimension_numbers<[1], [0], [0], [1], [0, 0, 1, 1], [], []>} : vector<256x64xf32>, vector<64x64xf32>, vector<256x64xf32> -> vector<256x64xf32>
    %c0_24 = arith.constant 0 : index
    %c0_25 = arith.constant 0 : index
    %25 = vector.load %arg11[%c0_24, %c0_25] : memref<1x64xf32, #tpu.memory_space<vmem>>, vector<1x64xf32>
    %26 = vector.broadcast %25 : vector<1x64xf32> to vector<256x64xf32>
    %27 = arith.addf %24, %26 : vector<256x64xf32>
    %cst_26 = arith.constant 0.000000e+00 : f32
    %28 = vector.broadcast %cst_26 : f32 to vector<256x64xf32>
    %29 = arith.maximumf %27, %28 : vector<256x64xf32>
    %c0_27 = arith.constant 0 : index
    %c0_28 = arith.constant 0 : index
    %30 = vector.load %arg12[%c0_27, %c0_28] : memref<64x8xf32, #tpu.memory_space<vmem>>, vector<64x8xf32>
    %cst_29 = arith.constant dense<0.000000e+00> : vector<256x8xf32>
    %31 = tpu.matmul %29, %30, %cst_29 {dimension_numbers = #tpu.dot_dimension_numbers<[1], [0], [0], [1], [0, 0, 1, 1], [], []>} : vector<256x64xf32>, vector<64x8xf32>, vector<256x8xf32> -> vector<256x8xf32>
    %c0_30 = arith.constant 0 : index
    %c0_31 = arith.constant 0 : index
    %32 = vector.load %arg13[%c0_30, %c0_31] : memref<1x8xf32, #tpu.memory_space<vmem>>, vector<1x8xf32>
    %33 = vector.broadcast %32 : vector<1x8xf32> to vector<256x8xf32>
    %34 = arith.addf %31, %33 : vector<256x8xf32>
    %35 = vector.extract_strided_slice %34 {offsets = [0, 0], sizes = [256, 3], strides = [1, 1]} : vector<256x8xf32> to vector<256x3xf32>
    %36 = math.tanh %35 : vector<256x3xf32>
    %c0_32 = arith.constant 0 : index
    %c0_33 = arith.constant 0 : index
    %37 = vector.load %arg14[%c0_32, %c0_33] : memref<256x3xf32, #tpu.memory_space<vmem>>, vector<256x3xf32>
    tpu.vector_store %arg14[%c0_32, %c0_33], %36 {strides = array<i32>} : memref<256x3xf32, #tpu.memory_space<vmem>>, vector<256x3xf32>,
    return
  }
  func.func @transform_0(%arg0: i32) -> (i32, i32) {
    %c0_i32 = arith.constant 0 : i32
    %c0_i32_0 = arith.constant 0 : i32
    return %arg0, %c0_i32 : i32, i32
  }
  func.func @transform_1(%arg0: i32) -> (i32, i32) {
    %c0_i32 = arith.constant 0 : i32
    %c0_i32_0 = arith.constant 0 : i32
    return %arg0, %c0_i32 : i32, i32
  }
  func.func @transform_2(%arg0: i32) -> (i32, i32) {
    %c0_i32 = arith.constant 0 : i32
    %c0_i32_0 = arith.constant 0 : i32
    return %arg0, %c0_i32 : i32, i32
  }
  func.func @transform_3(%arg0: i32) -> (i32, i32) {
    %c0_i32 = arith.constant 0 : i32
    %c0_i32_0 = arith.constant 0 : i32
    return %arg0, %c0_i32 : i32, i32
  }
  func.func @transform_4(%arg0: i32) -> (i32, i32) {
    %c0_i32 = arith.constant 0 : i32
    %c0_i32_0 = arith.constant 0 : i32
    %c0_i32_1 = arith.constant 0 : i32
    return %c0_i32, %c0_i32_0 : i32, i32
  }
  func.func @transform_5(%arg0: i32) -> (i32, i32) {
    %c0_i32 = arith.constant 0 : i32
    %c0_i32_0 = arith.constant 0 : i32
    %c0_i32_1 = arith.constant 0 : i32
    return %c0_i32, %c0_i32_0 : i32, i32
  }
  func.func @transform_6(%arg0: i32) -> (i32, i32) {
    %c0_i32 = arith.constant 0 : i32
    %c0_i32_0 = arith.constant 0 : i32
    %c0_i32_1 = arith.constant 0 : i32
    return %c0_i32, %c0_i32_0 : i32, i32
  }
  func.func @transform_7(%arg0: i32) -> (i32, i32) {
    %c0_i32 = arith.constant 0 : i32
    %c0_i32_0 = arith.constant 0 : i32
    %c0_i32_1 = arith.constant 0 : i32
    return %c0_i32, %c0_i32_0 : i32, i32
  }
  func.func @transform_8(%arg0: i32) -> (i32, i32) {
    %c0_i32 = arith.constant 0 : i32
    %c0_i32_0 = arith.constant 0 : i32
    %c0_i32_1 = arith.constant 0 : i32
    return %c0_i32, %c0_i32_0 : i32, i32
  }
  func.func @transform_9(%arg0: i32) -> (i32, i32) {
    %c0_i32 = arith.constant 0 : i32
    %c0_i32_0 = arith.constant 0 : i32
    %c0_i32_1 = arith.constant 0 : i32
    return %c0_i32, %c0_i32_0 : i32, i32
  }
  func.func @transform_10(%arg0: i32) -> (i32, i32) {
    %c0_i32 = arith.constant 0 : i32
    %c0_i32_0 = arith.constant 0 : i32
    %c0_i32_1 = arith.constant 0 : i32
    return %c0_i32, %c0_i32_0 : i32, i32
  }
  func.func @transform_11(%arg0: i32) -> (i32, i32) {
    %c0_i32 = arith.constant 0 : i32
    %c0_i32_0 = arith.constant 0 : i32
    %c0_i32_1 = arith.constant 0 : i32
    return %c0_i32, %c0_i32_0 : i32, i32
  }
  func.func @transform_12(%arg0: i32) -> (i32, i32) {
    %c0_i32 = arith.constant 0 : i32
    %c0_i32_0 = arith.constant 0 : i32
    %c0_i32_1 = arith.constant 0 : i32
    return %c0_i32, %c0_i32_0 : i32, i32
  }
  func.func @transform_13(%arg0: i32) -> (i32, i32) {
    %c0_i32 = arith.constant 0 : i32
    %c0_i32_0 = arith.constant 0 : i32
    return %arg0, %c0_i32 : i32, i32
  }
}

</mosaic_0001>

<llo_original>
// kernel: _run_mlp.1
$region0: #{_run_mlp.1}
  #allocation0 [shape = 'u32[]', space=smem, size = 0x4, offset = 0x4, fixed_abs, tag = 'smem constant byte address 0x4 - core index']
  #allocation1 [shape = 'u32[144,128]{1,0:T(1,128)}', space=vmem, size = 0x12000, scoped, tag = 'internal scratch']
  %s0 = inlined_call_operand.vmem [shape: f32[256,3], index: 0, kind: input, shape index: {}]
  %s1 = inlined_call_operand.vmem [shape: f32[256,3], index: 1, kind: input, shape index: {}]
  %s2 = inlined_call_operand.vmem [shape: f32[256,3], index: 2, kind: input, shape index: {}]
  %s3 = inlined_call_operand.vmem [shape: f32[256,16], index: 3, kind: input, shape index: {}]
  %s4 = inlined_call_operand.vmem [shape: f32[1,64], index: 4, kind: input, shape index: {}]
  %s5 = inlined_call_operand.vmem [shape: f32[8,64], index: 5, kind: input, shape index: {}]
  %s6 = inlined_call_operand.vmem [shape: f32[8,64], index: 6, kind: input, shape index: {}]
  %s7 = inlined_call_operand.vmem [shape: f32[8,64], index: 7, kind: input, shape index: {}]
  %s8 = inlined_call_operand.vmem [shape: f32[16,64], index: 8, kind: input, shape index: {}]
  %s9 = inlined_call_operand.vmem [shape: f32[64,64], index: 9, kind: input, shape index: {}]
  %s10 = inlined_call_operand.vmem [shape: f32[1,64], index: 10, kind: input, shape index: {}]
  %s11 = inlined_call_operand.vmem [shape: f32[64,8], index: 11, kind: input, shape index: {}]
  %s12 = inlined_call_operand.vmem [shape: f32[1,8], index: 12, kind: input, shape index: {}]
  %s13 = inlined_call_operand.vmem [shape: f32[256,3], index: 13, kind: output, shape index: {}]
  %s14 = sld [smem:[#allocation0]]
  $region62: #{_run_mlp.1} parent=0
    _
  %s16 = ssub.s32 1, %s14
  %s17 = scalar_select 0, %s16, %s14
  // Predicated region
  $region2: #{_run_mlp.1} parent=0 // pred_check
    _
  $region3: #{_run_mlp.1} parent=0 // pred_check_branch
    %19 = sbr.rel (0) target = $region5
  $region4: #{_run_mlp.1} parent=0 // pred_region
    _
  $region5: #{_run_mlp.1} parent=0 // pred_fallthru
    _
  // Predicated region
  $region6: #{_run_mlp.1} parent=0 // pred_check
    _
  $region7: #{_run_mlp.1} parent=0 // pred_check_branch
    %21 = sbr.rel (0) target = $region9
  $region8: #{_run_mlp.1} parent=0 // pred_region
    _
  $region9: #{_run_mlp.1} parent=0 // pred_fallthru
    _
  // Predicated region
  $region10: #{_run_mlp.1} parent=0 // pred_check
    _
  $region11: #{_run_mlp.1} parent=0 // pred_check_branch
    %23 = sbr.rel (0) target = $region13
  $region12: #{_run_mlp.1} parent=0 // pred_region
    _
  $region13: #{_run_mlp.1} parent=0 // pred_fallthru
    _
  // Predicated region
  $region14: #{_run_mlp.1} parent=0 // pred_check
    _
  $region15: #{_run_mlp.1} parent=0 // pred_check_branch
    %25 = sbr.rel (0) target = $region17
  $region16: #{_run_mlp.1} parent=0 // pred_region
    _
  $region17: #{_run_mlp.1} parent=0 // pred_fallthru
    _
  // Predicated region
  $region18: #{_run_mlp.1} parent=0 // pred_check
    _
  $region19: #{_run_mlp.1} parent=0 // pred_check_branch
    %27 = sbr.rel (0) target = $region21
  $region20: #{_run_mlp.1} parent=0 // pred_region
    _
  $region21: #{_run_mlp.1} parent=0 // pred_fallthru
    _
  // Predicated region
  $region22: #{_run_mlp.1} parent=0 // pred_check
    _
  $region23: #{_run_mlp.1} parent=0 // pred_check_branch
    %29 = sbr.rel (0) target = $region25
  $region24: #{_run_mlp.1} parent=0 // pred_region
    _
  $region25: #{_run_mlp.1} parent=0 // pred_fallthru
    _
  // Predicated region
  $region26: #{_run_mlp.1} parent=0 // pred_check
    _
  $region27: #{_run_mlp.1} parent=0 // pred_check_branch
    %31 = sbr.rel (0) target = $region29
  $region28: #{_run_mlp.1} parent=0 // pred_region
    _
  $region29: #{_run_mlp.1} parent=0 // pred_fallthru
    _
  // Predicated region
  $region30: #{_run_mlp.1} parent=0 // pred_check
    _
  $region31: #{_run_mlp.1} parent=0 // pred_check_branch
    %33 = sbr.rel (0) target = $region33
  $region32: #{_run_mlp.1} parent=0 // pred_region
    _
  $region33: #{_run_mlp.1} parent=0 // pred_fallthru
    _
  // Predicated region
  $region34: #{_run_mlp.1} parent=0 // pred_check
    _
  $region35: #{_run_mlp.1} parent=0 // pred_check_branch
    %35 = sbr.rel (0) target = $region37
  $region36: #{_run_mlp.1} parent=0 // pred_region
    _
  $region37: #{_run_mlp.1} parent=0 // pred_fallthru
    _
  // Predicated region
  $region38: #{_run_mlp.1} parent=0 // pred_check
    _
  $region39: #{_run_mlp.1} parent=0 // pred_check_branch
    %37 = sbr.rel (0) target = $region41
  $region40: #{_run_mlp.1} parent=0 // pred_region
    _
  $region41: #{_run_mlp.1} parent=0 // pred_fallthru
    _
  // Predicated region
  $region42: #{_run_mlp.1} parent=0 // pred_check
    _
  $region43: #{_run_mlp.1} parent=0 // pred_check_branch
    %39 = sbr.rel (0) target = $region45
  $region44: #{_run_mlp.1} parent=0 // pred_region
    _
  $region45: #{_run_mlp.1} parent=0 // pred_fallthru
    _
  // Predicated region
  $region46: #{_run_mlp.1} parent=0 // pred_check
    _
  $region47: #{_run_mlp.1} parent=0 // pred_check_branch
    %41 = sbr.rel (0) target = $region49
  $region48: #{_run_mlp.1} parent=0 // pred_region
    _
  $region49: #{_run_mlp.1} parent=0 // pred_fallthru
    _
  // Predicated region
  $region50: #{_run_mlp.1} parent=0 // pred_check
    _
  $region51: #{_run_mlp.1} parent=0 // pred_check_branch
    %43 = sbr.rel (0) target = $region53
  $region52: #{_run_mlp.1} parent=0 // pred_region
    _
  $region53: #{_run_mlp.1} parent=0 // pred_fallthru
    _
  %v44 = vld [vmem:[%s0] sm:$0xff]
  %v45 = vld [vmem:[%s0 + $0x8] sm:$0xff]
  %v46 = vld [vmem:[%s0 + $0x10] sm:$0xff]
  %v47 = vld [vmem:[%s0 + $0x18] sm:$0xff]
  %v48 = vld [vmem:[%s0 + $0x20] sm:$0xff]
  %v49 = vld [vmem:[%s0 + $0x28] sm:$0xff]
  %v50 = vld [vmem:[%s0 + $0x30] sm:$0xff]
  %v51 = vld [vmem:[%s0 + $0x38] sm:$0xff]
  %v52 = vld [vmem:[%s0 + $0x40] sm:$0xff]
  %v53 = vld [vmem:[%s0 + $0x48] sm:$0xff]
  %v54 = vld [vmem:[%s0 + $0x50] sm:$0xff]
  %v55 = vld [vmem:[%s0 + $0x58] sm:$0xff]
  %v56 = vld [vmem:[%s0 + $0x60] sm:$0xff]
  %v57 = vld [vmem:[%s0 + $0x68] sm:$0xff]
  %v58 = vld [vmem:[%s0 + $0x70] sm:$0xff]
  %v59 = vld [vmem:[%s0 + $0x78] sm:$0xff]
  %v60 = vld [vmem:[%s0 + $0x80] sm:$0xff]
  %v61 = vld [vmem:[%s0 + $0x88] sm:$0xff]
  %v62 = vld [vmem:[%s0 + $0x90] sm:$0xff]
  %v63 = vld [vmem:[%s0 + $0x98] sm:$0xff]
  %v64 = vld [vmem:[%s0 + $0xa0] sm:$0xff]
  %v65 = vld [vmem:[%s0 + $0xa8] sm:$0xff]
  %v66 = vld [vmem:[%s0 + $0xb0] sm:$0xff]
  %v67 = vld [vmem:[%s0 + $0xb8] sm:$0xff]
  %v68 = vld [vmem:[%s0 + $0xc0] sm:$0xff]
  %v69 = vld [vmem:[%s0 + $0xc8] sm:$0xff]
  %v70 = vld [vmem:[%s0 + $0xd0] sm:$0xff]
  %v71 = vld [vmem:[%s0 + $0xd8] sm:$0xff]
  %v72 = vld [vmem:[%s0 + $0xe0] sm:$0xff]
  %v73 = vld [vmem:[%s0 + $0xe8] sm:$0xff]
  %v74 = vld [vmem:[%s0 + $0xf0] sm:$0xff]
  %v75 = vld [vmem:[%s0 + $0xf8] sm:$0xff]
  %v76 = vld [vmem:[%s5] sm:$0xff]
  %v77 = vld [vmem:[%s1] sm:$0xff]
  %v78 = vld [vmem:[%s1 + $0x8] sm:$0xff]
  %v79 = vld [vmem:[%s1 + $0x10] sm:$0xff]
  %v80 = vld [vmem:[%s1 + $0x18] sm:$0xff]
  %v81 = vld [vmem:[%s1 + $0x20] sm:$0xff]
  %v82 = vld [vmem:[%s1 + $0x28] sm:$0xff]
  %v83 = vld [vmem:[%s1 + $0x30] sm:$0xff]
  %v84 = vld [vmem:[%s1 + $0x38] sm:$0xff]
  %v85 = vld [vmem:[%s1 + $0x40] sm:$0xff]
  %v86 = vld [vmem:[%s1 + $0x48] sm:$0xff]
  %v87 = vld [vmem:[%s1 + $0x50] sm:$0xff]
  %v88 = vld [vmem:[%s1 + $0x58] sm:$0xff]
  %v89 = vld [vmem:[%s1 + $0x60] sm:$0xff]
  %v90 = vld [vmem:[%s1 + $0x68] sm:$0xff]
  %v91 = vld [vmem:[%s1 + $0x70] sm:$0xff]
  %v92 = vld [vmem:[%s1 + $0x78] sm:$0xff]
  %v93 = vld [vmem:[%s1 + $0x80] sm:$0xff]
  %v94 = vld [vmem:[%s1 + $0x88] sm:$0xff]
  %v95 = vld [vmem:[%s1 + $0x90] sm:$0xff]
  %v96 = vld [vmem:[%s1 + $0x98] sm:$0xff]
  %v97 = vld [vmem:[%s1 + $0xa0] sm:$0xff]
  %v98 = vld [vmem:[%s1 + $0xa8] sm:$0xff]
  %v99 = vld [vmem:[%s1 + $0xb0] sm:$0xff]
  %v100 = vld [vmem:[%s1 + $0xb8] sm:$0xff]
  %v101 = vld [vmem:[%s1 + $0xc0] sm:$0xff]
  %v102 = vld [vmem:[%s1 + $0xc8] sm:$0xff]
  %v103 = vld [vmem:[%s1 + $0xd0] sm:$0xff]
  %v104 = vld [vmem:[%s1 + $0xd8] sm:$0xff]
  %v105 = vld [vmem:[%s1 + $0xe0] sm:$0xff]
  %v106 = vld [vmem:[%s1 + $0xe8] sm:$0xff]
  %v107 = vld [vmem:[%s1 + $0xf0] sm:$0xff]
  %v108 = vld [vmem:[%s1 + $0xf8] sm:$0xff]
  %v109 = vld [vmem:[%s6] sm:$0xff]
  %vm110 = vcmask 23552
  %v112 = vsel %vm110, %v77, 0
  %v115 = vsel %vm110, %v78, 0
  %v118 = vsel %vm110, %v79, 0
  %v121 = vsel %vm110, %v80, 0
  %v124 = vsel %vm110, %v81, 0
  %v127 = vsel %vm110, %v82, 0
  %v130 = vsel %vm110, %v83, 0
  %v133 = vsel %vm110, %v84, 0
  %v136 = vsel %vm110, %v85, 0
  %v139 = vsel %vm110, %v86, 0
  %v142 = vsel %vm110, %v87, 0
  %v145 = vsel %vm110, %v88, 0
  %v148 = vsel %vm110, %v89, 0
  %v151 = vsel %vm110, %v90, 0
  %v154 = vsel %vm110, %v91, 0
  %v157 = vsel %vm110, %v92, 0
  %v160 = vsel %vm110, %v93, 0
  %v163 = vsel %vm110, %v94, 0
  %v166 = vsel %vm110, %v95, 0
  %v169 = vsel %vm110, %v96, 0
  %v172 = vsel %vm110, %v97, 0
  %v175 = vsel %vm110, %v98, 0
  %v178 = vsel %vm110, %v99, 0
  %v181 = vsel %vm110, %v100, 0
  %v184 = vsel %vm110, %v101, 0
  %v187 = vsel %vm110, %v102, 0
  %v190 = vsel %vm110, %v103, 0
  %v193 = vsel %vm110, %v104, 0
  %v196 = vsel %vm110, %v105, 0
  %v199 = vsel %vm110, %v106, 0
  %v202 = vsel %vm110, %v107, 0
  %v205 = vsel %vm110, %v108, 0
  %vm207 = vcmask 1042432
  %v209 = vsel %vm207, %v109, 0
  %211 = vmatprep.subr.mxu0 0.0
  %212 = vmatpush1.msra.mxu0 %v209
  %213 = vmatprep.subr.mxu0 0.0
  %214 = vmatpush1.msra.mxu0 0.0
  %215 = vmatprep.subr.mxu0 0.0
  %216 = vmatpush1.msra.mxu0 0.0
  %217 = vmatprep.subr.mxu0 0.0
  %218 = vmatpush1.msra.mxu0 0.0
  %219 = vmatprep.subr.mxu0 0.0
  %220 = vmatpush1.msra.mxu0 0.0
  %221 = vmatprep.subr.mxu0 0.0
  %222 = vmatpush1.msra.mxu0 0.0
  %223 = vmatprep.subr.mxu0 0.0
  %224 = vmatpush1.msra.mxu0 0.0
  %225 = vmatprep.subr.mxu0 0.0
  %226 = vmatpush1.msra.mxu0 0.0
  %227 = vmatprep.subr.mxu0 0.0
  %228 = vmatpush1.msra.mxu0 0.0
  %229 = vmatprep.subr.mxu0 0.0
  %230 = vmatpush1.msra.mxu0 0.0
  %231 = vmatprep.subr.mxu0 0.0
  %232 = vmatpush1.msra.mxu0 0.0
  %233 = vmatprep.subr.mxu0 0.0
  %234 = vmatpush1.msra.mxu0 0.0
  %235 = vmatprep.subr.mxu0 0.0
  %236 = vmatpush1.msra.mxu0 0.0
  %237 = vmatprep.subr.mxu0 0.0
  %238 = vmatpush1.msra.mxu0 0.0
  %239 = vmatprep.subr.mxu0 0.0
  %240 = vmatpush1.msra.mxu0 0.0
  %241 = vmatprep.subr.mxu0 0.0
  %242 = vmatpush1.msra.mxu0 0.0
  %243 = vmatprep.subr.mxu0 0.0
  %244 = vmatpush1.msra.mxu0 0.0
  %245 = vmatprep.subr.mxu0 0.0
  %246 = vmatpush1.msra.mxu0 0.0
  %247 = vmatprep.subr.mxu0 0.0
  %248 = vmatpush1.msra.mxu0 0.0
  %249 = vmatprep.subr.mxu0 0.0
  %250 = vmatpush1.msra.mxu0 0.0
  %251 = vmatprep.subr.mxu0 0.0
  %252 = vmatpush1.msra.mxu0 0.0
  %253 = vmatprep.subr.mxu0 0.0
  %254 = vmatpush1.msra.mxu0 0.0
  %255 = vmatprep.subr.mxu0 0.0
  %256 = vmatpush1.msra.mxu0 0.0
  %257 = vmatprep.subr.mxu0 0.0
  %258 = vmatpush1.msra.mxu0 0.0
  %259 = vmatprep.subr.mxu0 0.0
  %260 = vmatpush1.msra.mxu0 0.0
  %261 = vmatprep.subr.mxu0 0.0
  %262 = vmatpush1.msra.mxu0 0.0
  %263 = vmatprep.subr.mxu0 0.0
  %264 = vmatpush1.msra.mxu0 0.0
  %265 = vmatprep.subr.mxu0 0.0
  %266 = vmatpush1.msra.mxu0 0.0
  %267 = vmatprep.subr.mxu0 0.0
  %268 = vmatpush1.msra.mxu0 0.0
  %269 = vmatprep.subr.mxu0 0.0
  %270 = vmatpush1.msra.mxu0 0.0
  %271 = vmatprep.subr.mxu0 0.0
  %272 = vmatpush1.msra.mxu0 0.0
  %273 = vmatprep.subr.mxu0 0.0
  %274 = vmatpush1.msra.mxu0 0.0
  %275 = vmatprep.mubr.f32.mxu0 0.0
  %276 = vmatmul.mubr.f32.gmra.mrb[0].mxu0 %v112
  %v277 = vpop.f32.mrb[0].mxu0
  %v278 = vadd.f32 0.0, %v277
  %v279 = vpop.f32.mrb[0].mxu0
  %280 = vmatprep.mubr.f32.mxu0 0.0
  %281 = vmatmul.mubr.f32.gmra.mrb[0].mxu0 %v115
  %v282 = vpop.f32.mrb[0].mxu0
  %v283 = vadd.f32 0.0, %v282
  %v284 = vpop.f32.mrb[0].mxu0
  %285 = vmatprep.mubr.f32.mxu0 0.0
  %286 = vmatmul.mubr.f32.gmra.mrb[0].mxu0 %v118
  %v287 = vpop.f32.mrb[0].mxu0
  %v288 = vadd.f32 0.0, %v287
  %v289 = vpop.f32.mrb[0].mxu0
  %290 = vmatprep.mubr.f32.mxu0 0.0
  %291 = vmatmul.mubr.f32.gmra.mrb[0].mxu0 %v121
  %v292 = vpop.f32.mrb[0].mxu0
  %v293 = vadd.f32 0.0, %v292
  %v294 = vpop.f32.mrb[0].mxu0
  %295 = vmatprep.mubr.f32.mxu0 0.0
  %296 = vmatmul.mubr.f32.gmra.mrb[0].mxu0 %v124
  %v297 = vpop.f32.mrb[0].mxu0
  %v298 = vadd.f32 0.0, %v297
  %v299 = vpop.f32.mrb[0].mxu0
  %300 = vmatprep.mubr.f32.mxu0 0.0
  %301 = vmatmul.mubr.f32.gmra.mrb[0].mxu0 %v127
  %v302 = vpop.f32.mrb[0].mxu0
  %v303 = vadd.f32 0.0, %v302
  %v304 = vpop.f32.mrb[0].mxu0
  %305 = vmatprep.mubr.f32.mxu0 0.0
  %306 = vmatmul.mubr.f32.gmra.mrb[0].mxu0 %v130
  %v307 = vpop.f32.mrb[0].mxu0
  %v308 = vadd.f32 0.0, %v307
  %v309 = vpop.f32.mrb[0].mxu0
  %310 = vmatprep.mubr.f32.mxu0 0.0
  %311 = vmatmul.mubr.f32.gmra.mrb[0].mxu0 %v133
  %v312 = vpop.f32.mrb[0].mxu0
  %v313 = vadd.f32 0.0, %v312
  %v314 = vpop.f32.mrb[0].mxu0
  %315 = vmatprep.mubr.f32.mxu0 0.0
  %316 = vmatmul.mubr.f32.gmra.mrb[0].mxu0 %v136
  %v317 = vpop.f32.mrb[0].mxu0
  %v318 = vadd.f32 0.0, %v317
  %v319 = vpop.f32.mrb[0].mxu0
  %320 = vmatprep.mubr.f32.mxu0 0.0
  %321 = vmatmul.mubr.f32.gmra.mrb[0].mxu0 %v139
  %v322 = vpop.f32.mrb[0].mxu0
  %v323 = vadd.f32 0.0, %v322
  %v324 = vpop.f32.mrb[0].mxu0
  %325 = vmatprep.mubr.f32.mxu0 0.0
  %326 = vmatmul.mubr.f32.gmra.mrb[0].mxu0 %v142
  %v327 = vpop.f32.mrb[0].mxu0
  %v328 = vadd.f32 0.0, %v327
  %v329 = vpop.f32.mrb[0].mxu0
  %330 = vmatprep.mubr.f32.mxu0 0.0
  %331 = vmatmul.mubr.f32.gmra.mrb[0].mxu0 %v145
  %v332 = vpop.f32.mrb[0].mxu0
  %v333 = vadd.f32 0.0, %v332
  %v334 = vpop.f32.mrb[0].mxu0
  %335 = vmatprep.mubr.f32.mxu0 0.0
  %336 = vmatmul.mubr.f32.gmra.mrb[0].mxu0 %v148
  %v337 = vpop.f32.mrb[0].mxu0
  %v338 = vadd.f32 0.0, %v337
  %v339 = vpop.f32.mrb[0].mxu0
  %340 = vmatprep.mubr.f32.mxu0 0.0
  %341 = vmatmul.mubr.f32.gmra.mrb[0].mxu0 %v151
  %v342 = vpop.f32.mrb[0].mxu0
  %v343 = vadd.f32 0.0, %v342
  %v344 = vpop.f32.mrb[0].mxu0
  %345 = vmatprep.mubr.f32.mxu0 0.0
  %346 = vmatmul.mubr.f32.gmra.mrb[0].mxu0 %v154
  %v347 = vpop.f32.mrb[0].mxu0
  %v348 = vadd.f32 0.0, %v347
  %v349 = vpop.f32.mrb[0].mxu0
  %350 = vmatprep.mubr.f32.mxu0 0.0
  %351 = vmatmul.mubr.f32.gmra.mrb[0].mxu0 %v157
  %v352 = vpop.f32.mrb[0].mxu0
  %v353 = vadd.f32 0.0, %v352
  %v354 = vpop.f32.mrb[0].mxu0
  %355 = vmatprep.mubr.f32.mxu0 0.0
  %356 = vmatmul.mubr.f32.gmra.mrb[0].mxu0 %v160
  %v357 = vpop.f32.mrb[0].mxu0
  %v358 = vadd.f32 0.0, %v357
  %v359 = vpop.f32.mrb[0].mxu0
  %360 = vmatprep.mubr.f32.mxu0 0.0
  %361 = vmatmul.mubr.f32.gmra.mrb[0].mxu0 %v163
  %v362 = vpop.f32.mrb[0].mxu0
  %v363 = vadd.f32 0.0, %v362
  %v364 = vpop.f32.mrb[0].mxu0
  %365 = vmatprep.mubr.f32.mxu0 0.0
  %366 = vmatmul.mubr.f32.gmra.mrb[0].mxu0 %v166
  %v367 = vpop.f32.mrb[0].mxu0
  %v368 = vadd.f32 0.0, %v367
  %v369 = vpop.f32.mrb[0].mxu0
  %370 = vmatprep.mubr.f32.mxu0 0.0
  %371 = vmatmul.mubr.f32.gmra.mrb[0].mxu0 %v169
  %v372 = vpop.f32.mrb[0].mxu0
  %v373 = vadd.f32 0.0, %v372
  %v374 = vpop.f32.mrb[0].mxu0
  %375 = vmatprep.mubr.f32.mxu0 0.0
  %376 = vmatmul.mubr.f32.gmra.mrb[0].mxu0 %v172
  %v377 = vpop.f32.mrb[0].mxu0
  %v378 = vadd.f32 0.0, %v377
  %v379 = vpop.f32.mrb[0].mxu0
  %380 = vmatprep.mubr.f32.mxu0 0.0
  %381 = vmatmul.mubr.f32.gmra.mrb[0].mxu0 %v175
  %v382 = vpop.f32.mrb[0].mxu0
  %v383 = vadd.f32 0.0, %v382
  %v384 = vpop.f32.mrb[0].mxu0
  %385 = vmatprep.mubr.f32.mxu0 0.0
  %386 = vmatmul.mubr.f32.gmra.mrb[0].mxu0 %v178
  %v387 = vpop.f32.mrb[0].mxu0
  %v388 = vadd.f32 0.0, %v387
  %v389 = vpop.f32.mrb[0].mxu0
  %390 = vmatprep.mubr.f32.mxu0 0.0
  %391 = vmatmul.mubr.f32.gmra.mrb[0].mxu0 %v181
  %v392 = vpop.f32.mrb[0].mxu0
  %v393 = vadd.f32 0.0, %v392
  %v394 = vpop.f32.mrb[0].mxu0
  %395 = vmatprep.mubr.f32.mxu0 0.0
  %396 = vmatmul.mubr.f32.gmra.mrb[0].mxu0 %v184
  %v397 = vpop.f32.mrb[0].mxu0
  %v398 = vadd.f32 0.0, %v397
  %v399 = vpop.f32.mrb[0].mxu0
  %400 = vmatprep.mubr.f32.mxu0 0.0
  %401 = vmatmul.mubr.f32.gmra.mrb[0].mxu0 %v187
  %v402 = vpop.f32.mrb[0].mxu0
  %v403 = vadd.f32 0.0, %v402
  %v404 = vpop.f32.mrb[0].mxu0
  %405 = vmatprep.mubr.f32.mxu0 0.0
  %406 = vmatmul.mubr.f32.gmra.mrb[0].mxu0 %v190
  %v407 = vpop.f32.mrb[0].mxu0
  %v408 = vadd.f32 0.0, %v407
  %v409 = vpop.f32.mrb[0].mxu0
  %410 = vmatprep.mubr.f32.mxu0 0.0
  %411 = vmatmul.mubr.f32.gmra.mrb[0].mxu0 %v193
  %v412 = vpop.f32.mrb[0].mxu0
  %v413 = vadd.f32 0.0, %v412
  %v414 = vpop.f32.mrb[0].mxu0
  %415 = vmatprep.mubr.f32.mxu0 0.0
  %416 = vmatmul.mubr.f32.gmra.mrb[0].mxu0 %v196
  %v417 = vpop.f32.mrb[0].mxu0
  %v418 = vadd.f32 0.0, %v417
  %v419 = vpop.f32.mrb[0].mxu0
  %420 = vmatprep.mubr.f32.mxu0 0.0
  %421 = vmatmul.mubr.f32.gmra.mrb[0].mxu0 %v199
  %v422 = vpop.f32.mrb[0].mxu0
  %v423 = vadd.f32 0.0, %v422
  %v424 = vpop.f32.mrb[0].mxu0
  %425 = vmatprep.mubr.f32.mxu0 0.0
  %426 = vmatmul.mubr.f32.gmra.mrb[0].mxu0 %v202
  %v427 = vpop.f32.mrb[0].mxu0
  %v428 = vadd.f32 0.0, %v427
  %v429 = vpop.f32.mrb[0].mxu0
  %430 = vmatprep.mubr.f32.mxu0 0.0
  %431 = vmatmul.mubr.f32.gmra.mrb[0].mxu0 %v205
  %v432 = vpop.f32.mrb[0].mxu0
  %v433 = vadd.f32 0.0, %v432
  %v434 = vpop.f32.mrb[0].mxu0
  %435 = vdwg.mxu0
  %v437 = vsel %vm110, %v44, 0
  %v440 = vsel %vm110, %v45, 0
  %v443 = vsel %vm110, %v46, 0
  %v446 = vsel %vm110, %v47, 0
  %v449 = vsel %vm110, %v48, 0
  %v452 = vsel %vm110, %v49, 0
  %v455 = vsel %vm110, %v50, 0
  %v458 = vsel %vm110, %v51, 0
  %v461 = vsel %vm110, %v52, 0
  %v464 = vsel %vm110, %v53, 0
  %v467 = vsel %vm110, %v54, 0
  %v470 = vsel %vm110, %v55, 0
  %v473 = vsel %vm110, %v56, 0
  %v476 = vsel %vm110, %v57, 0
  %v479 = vsel %vm110, %v58, 0
  %v482 = vsel %vm110, %v59, 0
  %v485 = vsel %vm110, %v60, 0
  %v488 = vsel %vm110, %v61, 0
  %v491 = vsel %vm110, %v62, 0
  %v494 = vsel %vm110, %v63, 0
  %v497 = vsel %vm110, %v64, 0
  %v500 = vsel %vm110, %v65, 0
  %v503 = vsel %vm110, %v66, 0
  %v506 = vsel %vm110, %v67, 0
  %v509 = vsel %vm110, %v68, 0
  %v512 = vsel %vm110, %v69, 0
  %v515 = vsel %vm110, %v70, 0
  %v518 = vsel %vm110, %v71, 0
  %v521 = vsel %vm110, %v72, 0
  %v524 = vsel %vm110, %v73, 0
  %v527 = vsel %vm110, %v74, 0
  %v530 = vsel %vm110, %v75, 0
  %v533 = vsel %vm207, %v76, 0
  %535 = vmatprep.subr.mxu0 0.0
  %536 = vmatpush1.msra.mxu0 %v533
  %537 = vmatprep.subr.mxu0 0.0
  %538 = vmatpush1.msra.mxu0 0.0
  %539 = vmatprep.subr.mxu0 0.0
  %540 = vmatpush1.msra.mxu0 0.0
  %541 = vmatprep.subr.mxu0 0.0
  %542 = vmatpush1.msra.mxu0 0.0
  %543 = vmatprep.subr.mxu0 0.0
  %544 = vmatpush1.msra.mxu0 0.0
  %545 = vmatprep.subr.mxu0 0.0
  %546 = vmatpush1.msra.mxu0 0.0
  %547 = vmatprep.subr.mxu0 0.0
  %548 = vmatpush1.msra.mxu0 0.0
  %549 = vmatprep.subr.mxu0 0.0
  %550 = vmatpush1.msra.mxu0 0.0
  %551 = vmatprep.subr.mxu0 0.0
  %552 = vmatpush1.msra.mxu0 0.0
  %553 = vmatprep.subr.mxu0 0.0
  %554 = vmatpush1.msra.mxu0 0.0
  %555 = vmatprep.subr.mxu0 0.0
  %556 = vmatpush1.msra.mxu0 0.0
  %557 = vmatprep.subr.mxu0 0.0
  %558 = vmatpush1.msra.mxu0 0.0
  %559 = vmatprep.subr.mxu0 0.0
  %560 = vmatpush1.msra.mxu0 0.0
  %561 = vmatprep.subr.mxu0 0.0
  %562 = vmatpush1.msra.mxu0 0.0
  %563 = vmatprep.subr.mxu0 0.0
  %564 = vmatpush1.msra.mxu0 0.0
  %565 = vmatprep.subr.mxu0 0.0
  %566 = vmatpush1.msra.mxu0 0.0
  %567 = vmatprep.subr.mxu0 0.0
  %568 = vmatpush1.msra.mxu0 0.0
  %569 = vmatprep.subr.mxu0 0.0
  %570 = vmatpush1.msra.mxu0 0.0
  %571 = vmatprep.subr.mxu0 0.0
  %572 = vmatpush1.msra.mxu0 0.0
  %573 = vmatprep.subr.mxu0 0.0
  %574 = vmatpush1.msra.mxu0 0.0
  %575 = vmatprep.subr.mxu0 0.0
  %576 = vmatpush1.msra.mxu0 0.0
  %577 = vmatprep.subr.mxu0 0.0
  %578 = vmatpush1.msra.mxu0 0.0
  %579 = vmatprep.subr.mxu0 0.0
  %580 = vmatpush1.msra.mxu0 0.0
  %581 = vmatprep.subr.mxu0 0.0
  %582 = vmatpush1.msra.mxu0 0.0
  %583 = vmatprep.subr.mxu0 0.0
  %584 = vmatpush1.msra.mxu0 0.0
  %585 = vmatprep.subr.mxu0 0.0
  %586 = vmatpush1.msra.mxu0 0.0
  %587 = vmatprep.subr.mxu0 0.0
  %588 = vmatpush1.msra.mxu0 0.0
  %589 = vmatprep.subr.mxu0 0.0
  %590 = vmatpush1.msra.mxu0 0.0
  %591 = vmatprep.subr.mxu0 0.0
  %592 = vmatpush1.msra.mxu0 0.0
  %593 = vmatprep.subr.mxu0 0.0
  %594 = vmatpush1.msra.mxu0 0.0
  %595 = vmatprep.subr.mxu0 0.0
  %596 = vmatpush1.msra.mxu0 0.0
  %597 = vmatprep.subr.mxu0 0.0
  %598 = vmatpush1.msra.mxu0 0.0
  %599 = vmatprep.mubr.f32.mxu0 0.0
  %600 = vmatmul.mubr.f32.gmra.mrb[0].mxu0 %v437
  %v601 = vpop.f32.mrb[0].mxu0
  %v602 = vadd.f32 %v278, %v601
  %v603 = vpop.f32.mrb[0].mxu0
  %604 = vmatprep.mubr.f32.mxu0 0.0
  %605 = vmatmul.mubr.f32.gmra.mrb[0].mxu0 %v440
  %v606 = vpop.f32.mrb[0].mxu0
  %v607 = vadd.f32 %v283, %v606
  %v608 = vpop.f32.mrb[0].mxu0
  %609 = vmatprep.mubr.f32.mxu0 0.0
  %610 = vmatmul.mubr.f32.gmra.mrb[0].mxu0 %v443
  %v611 = vpop.f32.mrb[0].mxu0
  %v612 = vadd.f32 %v288, %v611
  %v613 = vpop.f32.mrb[0].mxu0
  %614 = vmatprep.mubr.f32.mxu0 0.0
  %615 = vmatmul.mubr.f32.gmra.mrb[0].mxu0 %v446
  %v616 = vpop.f32.mrb[0].mxu0
  %v617 = vadd.f32 %v293, %v616
  %v618 = vpop.f32.mrb[0].mxu0
  %619 = vmatprep.mubr.f32.mxu0 0.0
  %620 = vmatmul.mubr.f32.gmra.mrb[0].mxu0 %v449
  %v621 = vpop.f32.mrb[0].mxu0
  %v622 = vadd.f32 %v298, %v621
  %v623 = vpop.f32.mrb[0].mxu0
  %624 = vmatprep.mubr.f32.mxu0 0.0
  %625 = vmatmul.mubr.f32.gmra.mrb[0].mxu0 %v452
  %v626 = vpop.f32.mrb[0].mxu0
  %v627 = vadd.f32 %v303, %v626
  %v628 = vpop.f32.mrb[0].mxu0
  %629 = vmatprep.mubr.f32.mxu0 0.0
  %630 = vmatmul.mubr.f32.gmra.mrb[0].mxu0 %v455
  %v631 = vpop.f32.mrb[0].mxu0
  %v632 = vadd.f32 %v308, %v631
  %v633 = vpop.f32.mrb[0].mxu0
  %634 = vmatprep.mubr.f32.mxu0 0.0
  %635 = vmatmul.mubr.f32.gmra.mrb[0].mxu0 %v458
  %v636 = vpop.f32.mrb[0].mxu0
  %v637 = vadd.f32 %v313, %v636
  %v638 = vpop.f32.mrb[0].mxu0
  %639 = vmatprep.mubr.f32.mxu0 0.0
  %640 = vmatmul.mubr.f32.gmra.mrb[0].mxu0 %v461
  %v641 = vpop.f32.mrb[0].mxu0
  %v642 = vadd.f32 %v318, %v641
  %v643 = vpop.f32.mrb[0].mxu0
  %644 = vmatprep.mubr.f32.mxu0 0.0
  %645 = vmatmul.mubr.f32.gmra.mrb[0].mxu0 %v464
  %v646 = vpop.f32.mrb[0].mxu0
  %v647 = vadd.f32 %v323, %v646
  %v648 = vpop.f32.mrb[0].mxu0
  %649 = vmatprep.mubr.f32.mxu0 0.0
  %650 = vmatmul.mubr.f32.gmra.mrb[0].mxu0 %v467
  %v651 = vpop.f32.mrb[0].mxu0
  %v652 = vadd.f32 %v328, %v651
  %v653 = vpop.f32.mrb[0].mxu0
  %654 = vmatprep.mubr.f32.mxu0 0.0
  %655 = vmatmul.mubr.f32.gmra.mrb[0].mxu0 %v470
  %v656 = vpop.f32.mrb[0].mxu0
  %v657 = vadd.f32 %v333, %v656
  %v658 = vpop.f32.mrb[0].mxu0
  %659 = vmatprep.mubr.f32.mxu0 0.0
  %660 = vmatmul.mubr.f32.gmra.mrb[0].mxu0 %v473
  %v661 = vpop.f32.mrb[0].mxu0
  %v662 = vadd.f32 %v338, %v661
  %v663 = vpop.f32.mrb[0].mxu0
  %664 = vmatprep.mubr.f32.mxu0 0.0
  %665 = vmatmul.mubr.f32.gmra.mrb[0].mxu0 %v476
  %v666 = vpop.f32.mrb[0].mxu0
  %v667 = vadd.f32 %v343, %v666
  %v668 = vpop.f32.mrb[0].mxu0
  %669 = vmatprep.mubr.f32.mxu0 0.0
  %670 = vmatmul.mubr.f32.gmra.mrb[0].mxu0 %v479
  %v671 = vpop.f32.mrb[0].mxu0
  %v672 = vadd.f32 %v348, %v671
  %v673 = vpop.f32.mrb[0].mxu0
  %674 = vmatprep.mubr.f32.mxu0 0.0
  %675 = vmatmul.mubr.f32.gmra.mrb[0].mxu0 %v482
  %v676 = vpop.f32.mrb[0].mxu0
  %v677 = vadd.f32 %v353, %v676
  %v678 = vpop.f32.mrb[0].mxu0
  %679 = vmatprep.mubr.f32.mxu0 0.0
  %680 = vmatmul.mubr.f32.gmra.mrb[0].mxu0 %v485
  %v681 = vpop.f32.mrb[0].mxu0
  %v682 = vadd.f32 %v358, %v681
  %v683 = vpop.f32.mrb[0].mxu0
  %684 = vmatprep.mubr.f32.mxu0 0.0
  %685 = vmatmul.mubr.f32.gmra.mrb[0].mxu0 %v488
  %v686 = vpop.f32.mrb[0].mxu0
  %v687 = vadd.f32 %v363, %v686
  %v688 = vpop.f32.mrb[0].mxu0
  %689 = vmatprep.mubr.f32.mxu0 0.0
  %690 = vmatmul.mubr.f32.gmra.mrb[0].mxu0 %v491
  %v691 = vpop.f32.mrb[0].mxu0
  %v692 = vadd.f32 %v368, %v691
  %v693 = vpop.f32.mrb[0].mxu0
  %694 = vmatprep.mubr.f32.mxu0 0.0
  %695 = vmatmul.mubr.f32.gmra.mrb[0].mxu0 %v494
  %v696 = vpop.f32.mrb[0].mxu0
  %v697 = vadd.f32 %v373, %v696
  %v698 = vpop.f32.mrb[0].mxu0
  %699 = vmatprep.mubr.f32.mxu0 0.0
  %700 = vmatmul.mubr.f32.gmra.mrb[0].mxu0 %v497
  %v701 = vpop.f32.mrb[0].mxu0
  %v702 = vadd.f32 %v378, %v701
  %v703 = vpop.f32.mrb[0].mxu0
  %704 = vmatprep.mubr.f32.mxu0 0.0
  %705 = vmatmul.mubr.f32.gmra.mrb[0].mxu0 %v500
  %v706 = vpop.f32.mrb[0].mxu0
  %v707 = vadd.f32 %v383, %v706
  %v708 = vpop.f32.mrb[0].mxu0
  %709 = vmatprep.mubr.f32.mxu0 0.0
  %710 = vmatmul.mubr.f32.gmra.mrb[0].mxu0 %v503
  %v711 = vpop.f32.mrb[0].mxu0
  %v712 = vadd.f32 %v388, %v711
  %v713 = vpop.f32.mrb[0].mxu0
  %714 = vmatprep.mubr.f32.mxu0 0.0
  %715 = vmatmul.mubr.f32.gmra.mrb[0].mxu0 %v506
  %v716 = vpop.f32.mrb[0].mxu0
  %v717 = vadd.f32 %v393, %v716
  %v718 = vpop.f32.mrb[0].mxu0
  %719 = vmatprep.mubr.f32.mxu0 0.0
  %720 = vmatmul.mubr.f32.gmra.mrb[0].mxu0 %v509
  %v721 = vpop.f32.mrb[0].mxu0
  %v722 = vadd.f32 %v398, %v721
  %v723 = vpop.f32.mrb[0].mxu0
  %724 = vmatprep.mubr.f32.mxu0 0.0
  %725 = vmatmul.mubr.f32.gmra.mrb[0].mxu0 %v512
  %v726 = vpop.f32.mrb[0].mxu0
  %v727 = vadd.f32 %v403, %v726
  %v728 = vpop.f32.mrb[0].mxu0
  %729 = vmatprep.mubr.f32.mxu0 0.0
  %730 = vmatmul.mubr.f32.gmra.mrb[0].mxu0 %v515
  %v731 = vpop.f32.mrb[0].mxu0
  %v732 = vadd.f32 %v408, %v731
  %v733 = vpop.f32.mrb[0].mxu0
  %734 = vmatprep.mubr.f32.mxu0 0.0
  %735 = vmatmul.mubr.f32.gmra.mrb[0].mxu0 %v518
  %v736 = vpop.f32.mrb[0].mxu0
  %v737 = vadd.f32 %v413, %v736
  %v738 = vpop.f32.mrb[0].mxu0
  %739 = vmatprep.mubr.f32.mxu0 0.0
  %740 = vmatmul.mubr.f32.gmra.mrb[0].mxu0 %v521
  %v741 = vpop.f32.mrb[0].mxu0
  %v742 = vadd.f32 %v418, %v741
  %v743 = vpop.f32.mrb[0].mxu0
  %744 = vmatprep.mubr.f32.mxu0 0.0
  %745 = vmatmul.mubr.f32.gmra.mrb[0].mxu0 %v524
  %v746 = vpop.f32.mrb[0].mxu0
  %v747 = vadd.f32 %v423, %v746
  %v748 = vpop.f32.mrb[0].mxu0
  %749 = vmatprep.mubr.f32.mxu0 0.0
  %750 = vmatmul.mubr.f32.gmra.mrb[0].mxu0 %v527
  %v751 = vpop.f32.mrb[0].mxu0
  %v752 = vadd.f32 %v428, %v751
  %v753 = vpop.f32.mrb[0].mxu0
  %754 = vmatprep.mubr.f32.mxu0 0.0
  %755 = vmatmul.mubr.f32.gmra.mrb[0].mxu0 %v530
  %v756 = vpop.f32.mrb[0].mxu0
  %v757 = vadd.f32 %v433, %v756
  %v758 = vpop.f32.mrb[0].mxu0
  %759 = vdwg.mxu0
  %v760 = vld [vmem:[%s2] sm:$0xff]
  %v761 = vld [vmem:[%s2 + $0x8] sm:$0xff]
  %v762 = vld [vmem:[%s2 + $0x10] sm:$0xff]
  %v763 = vld [vmem:[%s2 + $0x18] sm:$0xff]
  %v764 = vld [vmem:[%s2 + $0x20] sm:$0xff]
  %v765 = vld [vmem:[%s2 + $0x28] sm:$0xff]
  %v766 = vld [vmem:[%s2 + $0x30] sm:$0xff]
  %v767 = vld [vmem:[%s2 + $0x38] sm:$0xff]
  %v768 = vld [vmem:[%s2 + $0x40] sm:$0xff]
  %v769 = vld [vmem:[%s2 + $0x48] sm:$0xff]
  %v770 = vld [vmem:[%s2 + $0x50] sm:$0xff]
  %v771 = vld [vmem:[%s2 + $0x58] sm:$0xff]
  %v772 = vld [vmem:[%s2 + $0x60] sm:$0xff]
  %v773 = vld [vmem:[%s2 + $0x68] sm:$0xff]
  %v774 = vld [vmem:[%s2 + $0x70] sm:$0xff]
  %v775 = vld [vmem:[%s2 + $0x78] sm:$0xff]
  %v776 = vld [vmem:[%s2 + $0x80] sm:$0xff]
  %v777 = vld [vmem:[%s2 + $0x88] sm:$0xff]
  %v778 = vld [vmem:[%s2 + $0x90] sm:$0xff]
  %v779 = vld [vmem:[%s2 + $0x98] sm:$0xff]
  %v780 = vld [vmem:[%s2 + $0xa0] sm:$0xff]
  %v781 = vld [vmem:[%s2 + $0xa8] sm:$0xff]
  %v782 = vld [vmem:[%s2 + $0xb0] sm:$0xff]
  %v783 = vld [vmem:[%s2 + $0xb8] sm:$0xff]
  %v784 = vld [vmem:[%s2 + $0xc0] sm:$0xff]
  %v785 = vld [vmem:[%s2 + $0xc8] sm:$0xff]
  %v786 = vld [vmem:[%s2 + $0xd0] sm:$0xff]
  %v787 = vld [vmem:[%s2 + $0xd8] sm:$0xff]
  %v788 = vld [vmem:[%s2 + $0xe0] sm:$0xff]
  %v789 = vld [vmem:[%s2 + $0xe8] sm:$0xff]
  %v790 = vld [vmem:[%s2 + $0xf0] sm:$0xff]
  %v791 = vld [vmem:[%s2 + $0xf8] sm:$0xff]
  %v792 = vld [vmem:[%s7] sm:$0xff]
  %v794 = vsel %vm110, %v760, 0
  %v797 = vsel %vm110, %v761, 0
  %v800 = vsel %vm110, %v762, 0
  %v803 = vsel %vm110, %v763, 0
  %v806 = vsel %vm110, %v764, 0
  %v809 = vsel %vm110, %v765, 0
  %v812 = vsel %vm110, %v766, 0
  %v815 = vsel %vm110, %v767, 0
  %v818 = vsel %vm110, %v768, 0
  %v821 = vsel %vm110, %v769, 0
  %v824 = vsel %vm110, %v770, 0
  %v827 = vsel %vm110, %v771, 0
  %v830 = vsel %vm110, %v772, 0
  %v833 = vsel %vm110, %v773, 0
  %v836 = vsel %vm110, %v774, 0
  %v839 = vsel %vm110, %v775, 0
  %v842 = vsel %vm110, %v776, 0
  %v845 = vsel %vm110, %v777, 0
  %v848 = vsel %vm110, %v778, 0
  %v851 = vsel %vm110, %v779, 0
  %v854 = vsel %vm110, %v780, 0
  %v857 = vsel %vm110, %v781, 0
  %v860 = vsel %vm110, %v782, 0
  %v863 = vsel %vm110, %v783, 0
  %v866 = vsel %vm110, %v784, 0
  %v869 = vsel %vm110, %v785, 0
  %v872 = vsel %vm110, %v786, 0
  %v875 = vsel %vm110, %v787, 0
  %v878 = vsel %vm110, %v788, 0
  %v881 = vsel %vm110, %v789, 0
  %v884 = vsel %vm110, %v790, 0
  %v887 = vsel %vm110, %v791, 0
  %v890 = vsel %vm207, %v792, 0
  %892 = vmatprep.subr.mxu0 0.0
  %893 = vmatpush1.msra.mxu0 %v890
  %894 = vmatprep.subr.mxu0 0.0
  %895 = vmatpush1.msra.mxu0 0.0
  %896 = vmatprep.subr.mxu0 0.0
  %897 = vmatpush1.msra.mxu0 0.0
  %898 = vmatprep.subr.mxu0 0.0
  %899 = vmatpush1.msra.mxu0 0.0
  %900 = vmatprep.subr.mxu0 0.0
  %901 = vmatpush1.msra.mxu0 0.0
  %902 = vmatprep.subr.mxu0 0.0
  %903 = vmatpush1.msra.mxu0 0.0
  %904 = vmatprep.subr.mxu0 0.0
  %905 = vmatpush1.msra.mxu0 0.0
  %906 = vmatprep.subr.mxu0 0.0
  %907 = vmatpush1.msra.mxu0 0.0
  %908 = vmatprep.subr.mxu0 0.0
  %909 = vmatpush1.msra.mxu0 0.0
  %910 = vmatprep.subr.mxu0 0.0
  %911 = vmatpush1.msra.mxu0 0.0
  %912 = vmatprep.subr.mxu0 0.0
  %913 = vmatpush1.msra.mxu0 0.0
  %914 = vmatprep.subr.mxu0 0.0
  %915 = vmatpush1.msra.mxu0 0.0
  %916 = vmatprep.subr.mxu0 0.0
  %917 = vmatpush1.msra.mxu0 0.0
  %918 = vmatprep.subr.mxu0 0.0
  %919 = vmatpush1.msra.mxu0 0.0
  %920 = vmatprep.subr.mxu0 0.0
  %921 = vmatpush1.msra.mxu0 0.0
  %922 = vmatprep.subr.mxu0 0.0
  %923 = vmatpush1.msra.mxu0 0.0
  %924 = vmatprep.subr.mxu0 0.0
  %925 = vmatpush1.msra.mxu0 0.0
  %926 = vmatprep.subr.mxu0 0.0
  %927 = vmatpush1.msra.mxu0 0.0
  %928 = vmatprep.subr.mxu0 0.0
  %929 = vmatpush1.msra.mxu0 0.0
  %930 = vmatprep.subr.mxu0 0.0
  %931 = vmatpush1.msra.mxu0 0.0
  %932 = vmatprep.subr.mxu0 0.0
  %933 = vmatpush1.msra.mxu0 0.0
  %934 = vmatprep.subr.mxu0 0.0
  %935 = vmatpush1.msra.mxu0 0.0
  %936 = vmatprep.subr.mxu0 0.0
  %937 = vmatpush1.msra.mxu0 0.0
  %938 = vmatprep.subr.mxu0 0.0
  %939 = vmatpush1.msra.mxu0 0.0
  %940 = vmatprep.subr.mxu0 0.0
  %941 = vmatpush1.msra.mxu0 0.0
  %942 = vmatprep.subr.mxu0 0.0
  %943 = vmatpush1.msra.mxu0 0.0
  %944 = vmatprep.subr.mxu0 0.0
  %945 = vmatpush1.msra.mxu0 0.0
  %946 = vmatprep.subr.mxu0 0.0
  %947 = vmatpush1.msra.mxu0 0.0
  %948 = vmatprep.subr.mxu0 0.0
  %949 = vmatpush1.msra.mxu0 0.0
  %950 = vmatprep.subr.mxu0 0.0
  %951 = vmatpush1.msra.mxu0 0.0
  %952 = vmatprep.subr.mxu0 0.0
  %953 = vmatpush1.msra.mxu0 0.0
  %954 = vmatprep.subr.mxu0 0.0
  %955 = vmatpush1.msra.mxu0 0.0
  %956 = vmatprep.mubr.f32.mxu0 0.0
  %957 = vmatmul.mubr.f32.gmra.mrb[0].mxu0 %v794
  %v958 = vpop.f32.mrb[0].mxu0
  %v959 = vadd.f32 0.0, %v958
  %v960 = vpop.f32.mrb[0].mxu0
  %961 = vmatprep.mubr.f32.mxu0 0.0
  %962 = vmatmul.mubr.f32.gmra.mrb[0].mxu0 %v797
  %v963 = vpop.f32.mrb[0].mxu0
  %v964 = vadd.f32 0.0, %v963
  %v965 = vpop.f32.mrb[0].mxu0
  %966 = vmatprep.mubr.f32.mxu0 0.0
  %967 = vmatmul.mubr.f32.gmra.mrb[0].mxu0 %v800
  %v968 = vpop.f32.mrb[0].mxu0
  %v969 = vadd.f32 0.0, %v968
  %v970 = vpop.f32.mrb[0].mxu0
  %971 = vmatprep.mubr.f32.mxu0 0.0
  %972 = vmatmul.mubr.f32.gmra.mrb[0].mxu0 %v803
  %v973 = vpop.f32.mrb[0].mxu0
  %v974 = vadd.f32 0.0, %v973
  %v975 = vpop.f32.mrb[0].mxu0
  %976 = vmatprep.mubr.f32.mxu0 0.0
  %977 = vmatmul.mubr.f32.gmra.mrb[0].mxu0 %v806
  %v978 = vpop.f32.mrb[0].mxu0
  %v979 = vadd.f32 0.0, %v978
  %v980 = vpop.f32.mrb[0].mxu0
  %981 = vmatprep.mubr.f32.mxu0 0.0
  %982 = vmatmul.mubr.f32.gmra.mrb[0].mxu0 %v809
  %v983 = vpop.f32.mrb[0].mxu0
  %v984 = vadd.f32 0.0, %v983
  %v985 = vpop.f32.mrb[0].mxu0
  %986 = vmatprep.mubr.f32.mxu0 0.0
  %987 = vmatmul.mubr.f32.gmra.mrb[0].mxu0 %v812
  %v988 = vpop.f32.mrb[0].mxu0
  %v989 = vadd.f32 0.0, %v988
  %v990 = vpop.f32.mrb[0].mxu0
  %991 = vmatprep.mubr.f32.mxu0 0.0
  %992 = vmatmul.mubr.f32.gmra.mrb[0].mxu0 %v815
  %v993 = vpop.f32.mrb[0].mxu0
  %v994 = vadd.f32 0.0, %v993
  %v995 = vpop.f32.mrb[0].mxu0
  %996 = vmatprep.mubr.f32.mxu0 0.0
  %997 = vmatmul.mubr.f32.gmra.mrb[0].mxu0 %v818
  %v998 = vpop.f32.mrb[0].mxu0
  %v999 = vadd.f32 0.0, %v998
  %v1000 = vpop.f32.mrb[0].mxu0
  %1001 = vmatprep.mubr.f32.mxu0 0.0
  %1002 = vmatmul.mubr.f32.gmra.mrb[0].mxu0 %v821
  %v1003 = vpop.f32.mrb[0].mxu0
  %v1004 = vadd.f32 0.0, %v1003
  %v1005 = vpop.f32.mrb[0].mxu0
  %1006 = vmatprep.mubr.f32.mxu0 0.0
  %1007 = vmatmul.mubr.f32.gmra.mrb[0].mxu0 %v824
  %v1008 = vpop.f32.mrb[0].mxu0
  %v1009 = vadd.f32 0.0, %v1008
  %v1010 = vpop.f32.mrb[0].mxu0
  %1011 = vmatprep.mubr.f32.mxu0 0.0
  %1012 = vmatmul.mubr.f32.gmra.mrb[0].mxu0 %v827
  %v1013 = vpop.f32.mrb[0].mxu0
  %v1014 = vadd.f32 0.0, %v1013
  %v1015 = vpop.f32.mrb[0].mxu0
  %1016 = vmatprep.mubr.f32.mxu0 0.0
  %1017 = vmatmul.mubr.f32.gmra.mrb[0].mxu0 %v830
  %v1018 = vpop.f32.mrb[0].mxu0
  %v1019 = vadd.f32 0.0, %v1018
  %v1020 = vpop.f32.mrb[0].mxu0
  %1021 = vmatprep.mubr.f32.mxu0 0.0
  %1022 = vmatmul.mubr.f32.gmra.mrb[0].mxu0 %v833
  %v1023 = vpop.f32.mrb[0].mxu0
  %v1024 = vadd.f32 0.0, %v1023
  %v1025 = vpop.f32.mrb[0].mxu0
  %1026 = vmatprep.mubr.f32.mxu0 0.0
  %1027 = vmatmul.mubr.f32.gmra.mrb[0].mxu0 %v836
  %v1028 = vpop.f32.mrb[0].mxu0
  %v1029 = vadd.f32 0.0, %v1028
  %v1030 = vpop.f32.mrb[0].mxu0
  %1031 = vmatprep.mubr.f32.mxu0 0.0
  %1032 = vmatmul.mubr.f32.gmra.mrb[0].mxu0 %v839
  %v1033 = vpop.f32.mrb[0].mxu0
  %v1034 = vadd.f32 0.0, %v1033
  %v1035 = vpop.f32.mrb[0].mxu0
  %1036 = vmatprep.mubr.f32.mxu0 0.0
  %1037 = vmatmul.mubr.f32.gmra.mrb[0].mxu0 %v842
  %v1038 = vpop.f32.mrb[0].mxu0
  %v1039 = vadd.f32 0.0, %v1038
  %v1040 = vpop.f32.mrb[0].mxu0
  %1041 = vmatprep.mubr.f32.mxu0 0.0
  %1042 = vmatmul.mubr.f32.gmra.mrb[0].mxu0 %v845
  %v1043 = vpop.f32.mrb[0].mxu0
  %v1044 = vadd.f32 0.0, %v1043
  %v1045 = vpop.f32.mrb[0].mxu0
  %1046 = vmatprep.mubr.f32.mxu0 0.0
  %1047 = vmatmul.mubr.f32.gmra.mrb[0].mxu0 %v848
  %v1048 = vpop.f32.mrb[0].mxu0
  %v1049 = vadd.f32 0.0, %v1048
  %v1050 = vpop.f32.mrb[0].mxu0
  %1051 = vmatprep.mubr.f32.mxu0 0.0
  %1052 = vmatmul.mubr.f32.gmra.mrb[0].mxu0 %v851
  %v1053 = vpop.f32.mrb[0].mxu0
  %v1054 = vadd.f32 0.0, %v1053
  %v1055 = vpop.f32.mrb[0].mxu0
  %1056 = vmatprep.mubr.f32.mxu0 0.0
  %1057 = vmatmul.mubr.f32.gmra.mrb[0].mxu0 %v854
  %v1058 = vpop.f32.mrb[0].mxu0
  %v1059 = vadd.f32 0.0, %v1058
  %v1060 = vpop.f32.mrb[0].mxu0
  %1061 = vmatprep.mubr.f32.mxu0 0.0
  %1062 = vmatmul.mubr.f32.gmra.mrb[0].mxu0 %v857
  %v1063 = vpop.f32.mrb[0].mxu0
  %v1064 = vadd.f32 0.0, %v1063
  %v1065 = vpop.f32.mrb[0].mxu0
  %1066 = vmatprep.mubr.f32.mxu0 0.0
  %1067 = vmatmul.mubr.f32.gmra.mrb[0].mxu0 %v860
  %v1068 = vpop.f32.mrb[0].mxu0
  %v1069 = vadd.f32 0.0, %v1068
  %v1070 = vpop.f32.mrb[0].mxu0
  %1071 = vmatprep.mubr.f32.mxu0 0.0
  %1072 = vmatmul.mubr.f32.gmra.mrb[0].mxu0 %v863
  %v1073 = vpop.f32.mrb[0].mxu0
  %v1074 = vadd.f32 0.0, %v1073
  %v1075 = vpop.f32.mrb[0].mxu0
  %1076 = vmatprep.mubr.f32.mxu0 0.0
  %1077 = vmatmul.mubr.f32.gmra.mrb[0].mxu0 %v866
  %v1078 = vpop.f32.mrb[0].mxu0
  %v1079 = vadd.f32 0.0, %v1078
  %v1080 = vpop.f32.mrb[0].mxu0
  %1081 = vmatprep.mubr.f32.mxu0 0.0
  %1082 = vmatmul.mubr.f32.gmra.mrb[0].mxu0 %v869
  %v1083 = vpop.f32.mrb[0].mxu0
  %v1084 = vadd.f32 0.0, %v1083
  %v1085 = vpop.f32.mrb[0].mxu0
  %1086 = vmatprep.mubr.f32.mxu0 0.0
  %1087 = vmatmul.mubr.f32.gmra.mrb[0].mxu0 %v872
  %v1088 = vpop.f32.mrb[0].mxu0
  %v1089 = vadd.f32 0.0, %v1088
  %v1090 = vpop.f32.mrb[0].mxu0
  %1091 = vmatprep.mubr.f32.mxu0 0.0
  %1092 = vmatmul.mubr.f32.gmra.mrb[0].mxu0 %v875
  %v1093 = vpop.f32.mrb[0].mxu0
  %v1094 = vadd.f32 0.0, %v1093
  %v1095 = vpop.f32.mrb[0].mxu0
  %1096 = vmatprep.mubr.f32.mxu0 0.0
  %1097 = vmatmul.mubr.f32.gmra.mrb[0].mxu0 %v878
  %v1098 = vpop.f32.mrb[0].mxu0
  %v1099 = vadd.f32 0.0, %v1098
  %v1100 = vpop.f32.mrb[0].mxu0
  %1101 = vmatprep.mubr.f32.mxu0 0.0
  %1102 = vmatmul.mubr.f32.gmra.mrb[0].mxu0 %v881
  %v1103 = vpop.f32.mrb[0].mxu0
  %v1104 = vadd.f32 0.0, %v1103
  %v1105 = vpop.f32.mrb[0].mxu0
  %1106 = vmatprep.mubr.f32.mxu0 0.0
  %1107 = vmatmul.mubr.f32.gmra.mrb[0].mxu0 %v884
  %v1108 = vpop.f32.mrb[0].mxu0
  %v1109 = vadd.f32 0.0, %v1108
  %v1110 = vpop.f32.mrb[0].mxu0
  %1111 = vmatprep.mubr.f32.mxu0 0.0
  %1112 = vmatmul.mubr.f32.gmra.mrb[0].mxu0 %v887
  %v1113 = vpop.f32.mrb[0].mxu0
  %v1114 = vadd.f32 0.0, %v1113
  %v1115 = vpop.f32.mrb[0].mxu0
  %1116 = vdwg.mxu0
  %v1117 = vadd.f32 %v602, %v959
  %v1118 = vadd.f32 %v607, %v964
  %v1119 = vadd.f32 %v612, %v969
  %v1120 = vadd.f32 %v617, %v974
  %v1121 = vadd.f32 %v622, %v979
  %v1122 = vadd.f32 %v627, %v984
  %v1123 = vadd.f32 %v632, %v989
  %v1124 = vadd.f32 %v637, %v994
  %v1125 = vadd.f32 %v642, %v999
  %v1126 = vadd.f32 %v647, %v1004
  %v1127 = vadd.f32 %v652, %v1009
  %v1128 = vadd.f32 %v657, %v1014
  %v1129 = vadd.f32 %v662, %v1019
  %v1130 = vadd.f32 %v667, %v1024
  %v1131 = vadd.f32 %v672, %v1029
  %v1132 = vadd.f32 %v677, %v1034
  %v1133 = vadd.f32 %v682, %v1039
  %v1134 = vadd.f32 %v687, %v1044
  %v1135 = vadd.f32 %v692, %v1049
  %v1136 = vadd.f32 %v697, %v1054
  %v1137 = vadd.f32 %v702, %v1059
  %v1138 = vadd.f32 %v707, %v1064
  %v1139 = vadd.f32 %v712, %v1069
  %v1140 = vadd.f32 %v717, %v1074
  %v1141 = vadd.f32 %v722, %v1079
  %v1142 = vadd.f32 %v727, %v1084
  %v1143 = vadd.f32 %v732, %v1089
  %v1144 = vadd.f32 %v737, %v1094
  %v1145 = vadd.f32 %v742, %v1099
  %v1146 = vadd.f32 %v747, %v1104
  %v1147 = vadd.f32 %v752, %v1109
  %v1148 = vadd.f32 %v757, %v1114
  %v1149 = vld [vmem:[%s3] sm:$0xff]
  %v1150 = vld [vmem:[%s3 + $0x8] sm:$0xff]
  %v1151 = vld [vmem:[%s3 + $0x10] sm:$0xff]
  %v1152 = vld [vmem:[%s3 + $0x18] sm:$0xff]
  %v1153 = vld [vmem:[%s3 + $0x20] sm:$0xff]
  %v1154 = vld [vmem:[%s3 + $0x28] sm:$0xff]
  %v1155 = vld [vmem:[%s3 + $0x30] sm:$0xff]
  %v1156 = vld [vmem:[%s3 + $0x38] sm:$0xff]
  %v1157 = vld [vmem:[%s3 + $0x40] sm:$0xff]
  %v1158 = vld [vmem:[%s3 + $0x48] sm:$0xff]
  %v1159 = vld [vmem:[%s3 + $0x50] sm:$0xff]
  %v1160 = vld [vmem:[%s3 + $0x58] sm:$0xff]
  %v1161 = vld [vmem:[%s3 + $0x60] sm:$0xff]
  %v1162 = vld [vmem:[%s3 + $0x68] sm:$0xff]
  %v1163 = vld [vmem:[%s3 + $0x70] sm:$0xff]
  %v1164 = vld [vmem:[%s3 + $0x78] sm:$0xff]
  %v1165 = vld [vmem:[%s3 + $0x80] sm:$0xff]
  %v1166 = vld [vmem:[%s3 + $0x88] sm:$0xff]
  %v1167 = vld [vmem:[%s3 + $0x90] sm:$0xff]
  %v1168 = vld [vmem:[%s3 + $0x98] sm:$0xff]
  %v1169 = vld [vmem:[%s3 + $0xa0] sm:$0xff]
  %v1170 = vld [vmem:[%s3 + $0xa8] sm:$0xff]
  %v1171 = vld [vmem:[%s3 + $0xb0] sm:$0xff]
  %v1172 = vld [vmem:[%s3 + $0xb8] sm:$0xff]
  %v1173 = vld [vmem:[%s3 + $0xc0] sm:$0xff]
  %v1174 = vld [vmem:[%s3 + $0xc8] sm:$0xff]
  %v1175 = vld [vmem:[%s3 + $0xd0] sm:$0xff]
  %v1176 = vld [vmem:[%s3 + $0xd8] sm:$0xff]
  %v1177 = vld [vmem:[%s3 + $0xe0] sm:$0xff]
  %v1178 = vld [vmem:[%s3 + $0xe8] sm:$0xff]
  %v1179 = vld [vmem:[%s3 + $0xf0] sm:$0xff]
  %v1180 = vld [vmem:[%s3 + $0xf8] sm:$0xff]
  %v1181 = vld [vmem:[%s8] sm:$0xff]
  %v1182 = vld [vmem:[%s8 + $0x8] sm:$0xff]
  %vm1183 = vcmask 130048
  %v1185 = vsel %vm1183, %v1149, 0
  %v1188 = vsel %vm1183, %v1150, 0
  %v1191 = vsel %vm1183, %v1151, 0
  %v1194 = vsel %vm1183, %v1152, 0
  %v1197 = vsel %vm1183, %v1153, 0
  %v1200 = vsel %vm1183, %v1154, 0
  %v1203 = vsel %vm1183, %v1155, 0
  %v1206 = vsel %vm1183, %v1156, 0
  %v1209 = vsel %vm1183, %v1157, 0
  %v1212 = vsel %vm1183, %v1158, 0
  %v1215 = vsel %vm1183, %v1159, 0
  %v1218 = vsel %vm1183, %v1160, 0
  %v1221 = vsel %vm1183, %v1161, 0
  %v1224 = vsel %vm1183, %v1162, 0
  %v1227 = vsel %vm1183, %v1163, 0
  %v1230 = vsel %vm1183, %v1164, 0
  %v1233 = vsel %vm1183, %v1165, 0
  %v1236 = vsel %vm1183, %v1166, 0
  %v1239 = vsel %vm1183, %v1167, 0
  %v1242 = vsel %vm1183, %v1168, 0
  %v1245 = vsel %vm1183, %v1169, 0
  %v1248 = vsel %vm1183, %v1170, 0
  %v1251 = vsel %vm1183, %v1171, 0
  %v1254 = vsel %vm1183, %v1172, 0
  %v1257 = vsel %vm1183, %v1173, 0
  %v1260 = vsel %vm1183, %v1174, 0
  %v1263 = vsel %vm1183, %v1175, 0
  %v1266 = vsel %vm1183, %v1176, 0
  %v1269 = vsel %vm1183, %v1177, 0
  %v1272 = vsel %vm1183, %v1178, 0
  %v1275 = vsel %vm1183, %v1179, 0
  %v1278 = vsel %vm1183, %v1180, 0
  %1280 = vmatprep.subr.mxu0 0.0
  %1281 = vmatpush1.msra.mxu0 %v1181
  %1282 = vmatprep.subr.mxu0 0.0
  %1283 = vmatpush1.msra.mxu0 %v1182
  %1284 = vmatprep.subr.mxu0 0.0
  %1285 = vmatpush1.msra.mxu0 0.0
  %1286 = vmatprep.subr.mxu0 0.0
  %1287 = vmatpush1.msra.mxu0 0.0
  %1288 = vmatprep.subr.mxu0 0.0
  %1289 = vmatpush1.msra.mxu0 0.0
  %1290 = vmatprep.subr.mxu0 0.0
  %1291 = vmatpush1.msra.mxu0 0.0
  %1292 = vmatprep.subr.mxu0 0.0
  %1293 = vmatpush1.msra.mxu0 0.0
  %1294 = vmatprep.subr.mxu0 0.0
  %1295 = vmatpush1.msra.mxu0 0.0
  %1296 = vmatprep.subr.mxu0 0.0
  %1297 = vmatpush1.msra.mxu0 0.0
  %1298 = vmatprep.subr.mxu0 0.0
  %1299 = vmatpush1.msra.mxu0 0.0
  %1300 = vmatprep.subr.mxu0 0.0
  %1301 = vmatpush1.msra.mxu0 0.0
  %1302 = vmatprep.subr.mxu0 0.0
  %1303 = vmatpush1.msra.mxu0 0.0
  %1304 = vmatprep.subr.mxu0 0.0
  %1305 = vmatpush1.msra.mxu0 0.0
  %1306 = vmatprep.subr.mxu0 0.0
  %1307 = vmatpush1.msra.mxu0 0.0
  %1308 = vmatprep.subr.mxu0 0.0
  %1309 = vmatpush1.msra.mxu0 0.0
  %1310 = vmatprep.subr.mxu0 0.0
  %1311 = vmatpush1.msra.mxu0 0.0
  %1312 = vmatprep.subr.mxu0 0.0
  %1313 = vmatpush1.msra.mxu0 0.0
  %1314 = vmatprep.subr.mxu0 0.0
  %1315 = vmatpush1.msra.mxu0 0.0
  %1316 = vmatprep.subr.mxu0 0.0
  %1317 = vmatpush1.msra.mxu0 0.0
  %1318 = vmatprep.subr.mxu0 0.0
  %1319 = vmatpush1.msra.mxu0 0.0
  %1320 = vmatprep.subr.mxu0 0.0
  %1321 = vmatpush1.msra.mxu0 0.0
  %1322 = vmatprep.subr.mxu0 0.0
  %1323 = vmatpush1.msra.mxu0 0.0
  %1324 = vmatprep.subr.mxu0 0.0
  %1325 = vmatpush1.msra.mxu0 0.0
  %1326 = vmatprep.subr.mxu0 0.0
  %1327 = vmatpush1.msra.mxu0 0.0
  %1328 = vmatprep.subr.mxu0 0.0
  %1329 = vmatpush1.msra.mxu0 0.0
  %1330 = vmatprep.subr.mxu0 0.0
  %1331 = vmatpush1.msra.mxu0 0.0
  %1332 = vmatprep.subr.mxu0 0.0
  %1333 = vmatpush1.msra.mxu0 0.0
  %1334 = vmatprep.subr.mxu0 0.0
  %1335 = vmatpush1.msra.mxu0 0.0
  %1336 = vmatprep.subr.mxu0 0.0
  %1337 = vmatpush1.msra.mxu0 0.0
  %1338 = vmatprep.subr.mxu0 0.0
  %1339 = vmatpush1.msra.mxu0 0.0
  %1340 = vmatprep.subr.mxu0 0.0
  %1341 = vmatpush1.msra.mxu0 0.0
  %1342 = vmatprep.subr.mxu0 0.0
  %1343 = vmatpush1.msra.mxu0 0.0
  %1344 = vmatprep.mubr.f32.mxu0 0.0
  %1345 = vmatmul.mubr.f32.gmra.mrb[0].mxu0 %v1185
  %v1346 = vpop.f32.mrb[0].mxu0
  %v1347 = vadd.f32 0.0, %v1346
  %v1348 = vpop.f32.mrb[0].mxu0
  %1349 = vmatprep.mubr.f32.mxu0 0.0
  %1350 = vmatmul.mubr.f32.gmra.mrb[0].mxu0 %v1188
  %v1351 = vpop.f32.mrb[0].mxu0
  %v1352 = vadd.f32 0.0, %v1351
  %v1353 = vpop.f32.mrb[0].mxu0
  %1354 = vmatprep.mubr.f32.mxu0 0.0
  %1355 = vmatmul.mubr.f32.gmra.mrb[0].mxu0 %v1191
  %v1356 = vpop.f32.mrb[0].mxu0
  %v1357 = vadd.f32 0.0, %v1356
  %v1358 = vpop.f32.mrb[0].mxu0
  %1359 = vmatprep.mubr.f32.mxu0 0.0
  %1360 = vmatmul.mubr.f32.gmra.mrb[0].mxu0 %v1194
  %v1361 = vpop.f32.mrb[0].mxu0
  %v1362 = vadd.f32 0.0, %v1361
  %v1363 = vpop.f32.mrb[0].mxu0
  %1364 = vmatprep.mubr.f32.mxu0 0.0
  %1365 = vmatmul.mubr.f32.gmra.mrb[0].mxu0 %v1197
  %v1366 = vpop.f32.mrb[0].mxu0
  %v1367 = vadd.f32 0.0, %v1366
  %v1368 = vpop.f32.mrb[0].mxu0
  %1369 = vmatprep.mubr.f32.mxu0 0.0
  %1370 = vmatmul.mubr.f32.gmra.mrb[0].mxu0 %v1200
  %v1371 = vpop.f32.mrb[0].mxu0
  %v1372 = vadd.f32 0.0, %v1371
  %v1373 = vpop.f32.mrb[0].mxu0
  %1374 = vmatprep.mubr.f32.mxu0 0.0
  %1375 = vmatmul.mubr.f32.gmra.mrb[0].mxu0 %v1203
  %v1376 = vpop.f32.mrb[0].mxu0
  %v1377 = vadd.f32 0.0, %v1376
  %v1378 = vpop.f32.mrb[0].mxu0
  %1379 = vmatprep.mubr.f32.mxu0 0.0
  %1380 = vmatmul.mubr.f32.gmra.mrb[0].mxu0 %v1206
  %v1381 = vpop.f32.mrb[0].mxu0
  %v1382 = vadd.f32 0.0, %v1381
  %v1383 = vpop.f32.mrb[0].mxu0
  %1384 = vmatprep.mubr.f32.mxu0 0.0
  %1385 = vmatmul.mubr.f32.gmra.mrb[0].mxu0 %v1209
  %v1386 = vpop.f32.mrb[0].mxu0
  %v1387 = vadd.f32 0.0, %v1386
  %v1388 = vpop.f32.mrb[0].mxu0
  %1389 = vmatprep.mubr.f32.mxu0 0.0
  %1390 = vmatmul.mubr.f32.gmra.mrb[0].mxu0 %v1212
  %v1391 = vpop.f32.mrb[0].mxu0
  %v1392 = vadd.f32 0.0, %v1391
  %v1393 = vpop.f32.mrb[0].mxu0
  %1394 = vmatprep.mubr.f32.mxu0 0.0
  %1395 = vmatmul.mubr.f32.gmra.mrb[0].mxu0 %v1215
  %v1396 = vpop.f32.mrb[0].mxu0
  %v1397 = vadd.f32 0.0, %v1396
  %v1398 = vpop.f32.mrb[0].mxu0
  %1399 = vmatprep.mubr.f32.mxu0 0.0
  %1400 = vmatmul.mubr.f32.gmra.mrb[0].mxu0 %v1218
  %v1401 = vpop.f32.mrb[0].mxu0
  %v1402 = vadd.f32 0.0, %v1401
  %v1403 = vpop.f32.mrb[0].mxu0
  %1404 = vmatprep.mubr.f32.mxu0 0.0
  %1405 = vmatmul.mubr.f32.gmra.mrb[0].mxu0 %v1221
  %v1406 = vpop.f32.mrb[0].mxu0
  %v1407 = vadd.f32 0.0, %v1406
  %v1408 = vpop.f32.mrb[0].mxu0
  %1409 = vmatprep.mubr.f32.mxu0 0.0
  %1410 = vmatmul.mubr.f32.gmra.mrb[0].mxu0 %v1224
  %v1411 = vpop.f32.mrb[0].mxu0
  %v1412 = vadd.f32 0.0, %v1411
  %v1413 = vpop.f32.mrb[0].mxu0
  %1414 = vmatprep.mubr.f32.mxu0 0.0
  %1415 = vmatmul.mubr.f32.gmra.mrb[0].mxu0 %v1227
  %v1416 = vpop.f32.mrb[0].mxu0
  %v1417 = vadd.f32 0.0, %v1416
  %v1418 = vpop.f32.mrb[0].mxu0
  %1419 = vmatprep.mubr.f32.mxu0 0.0
  %1420 = vmatmul.mubr.f32.gmra.mrb[0].mxu0 %v1230
  %v1421 = vpop.f32.mrb[0].mxu0
  %v1422 = vadd.f32 0.0, %v1421
  %v1423 = vpop.f32.mrb[0].mxu0
  %1424 = vmatprep.mubr.f32.mxu0 0.0
  %1425 = vmatmul.mubr.f32.gmra.mrb[0].mxu0 %v1233
  %v1426 = vpop.f32.mrb[0].mxu0
  %v1427 = vadd.f32 0.0, %v1426
  %v1428 = vpop.f32.mrb[0].mxu0
  %1429 = vmatprep.mubr.f32.mxu0 0.0
  %1430 = vmatmul.mubr.f32.gmra.mrb[0].mxu0 %v1236
  %v1431 = vpop.f32.mrb[0].mxu0
  %v1432 = vadd.f32 0.0, %v1431
  %v1433 = vpop.f32.mrb[0].mxu0
  %1434 = vmatprep.mubr.f32.mxu0 0.0
  %1435 = vmatmul.mubr.f32.gmra.mrb[0].mxu0 %v1239
  %v1436 = vpop.f32.mrb[0].mxu0
  %v1437 = vadd.f32 0.0, %v1436
  %v1438 = vpop.f32.mrb[0].mxu0
  %1439 = vmatprep.mubr.f32.mxu0 0.0
  %1440 = vmatmul.mubr.f32.gmra.mrb[0].mxu0 %v1242
  %v1441 = vpop.f32.mrb[0].mxu0
  %v1442 = vadd.f32 0.0, %v1441
  %v1443 = vpop.f32.mrb[0].mxu0
  %1444 = vmatprep.mubr.f32.mxu0 0.0
  %1445 = vmatmul.mubr.f32.gmra.mrb[0].mxu0 %v1245
  %v1446 = vpop.f32.mrb[0].mxu0
  %v1447 = vadd.f32 0.0, %v1446
  %v1448 = vpop.f32.mrb[0].mxu0
  %1449 = vmatprep.mubr.f32.mxu0 0.0
  %1450 = vmatmul.mubr.f32.gmra.mrb[0].mxu0 %v1248
  %v1451 = vpop.f32.mrb[0].mxu0
  %v1452 = vadd.f32 0.0, %v1451
  %v1453 = vpop.f32.mrb[0].mxu0
  %1454 = vmatprep.mubr.f32.mxu0 0.0
  %1455 = vmatmul.mubr.f32.gmra.mrb[0].mxu0 %v1251
  %v1456 = vpop.f32.mrb[0].mxu0
  %v1457 = vadd.f32 0.0, %v1456
  %v1458 = vpop.f32.mrb[0].mxu0
  %1459 = vmatprep.mubr.f32.mxu0 0.0
  %1460 = vmatmul.mubr.f32.gmra.mrb[0].mxu0 %v1254
  %v1461 = vpop.f32.mrb[0].mxu0
  %v1462 = vadd.f32 0.0, %v1461
  %v1463 = vpop.f32.mrb[0].mxu0
  %1464 = vmatprep.mubr.f32.mxu0 0.0
  %1465 = vmatmul.mubr.f32.gmra.mrb[0].mxu0 %v1257
  %v1466 = vpop.f32.mrb[0].mxu0
  %v1467 = vadd.f32 0.0, %v1466
  %v1468 = vpop.f32.mrb[0].mxu0
  %1469 = vmatprep.mubr.f32.mxu0 0.0
  %1470 = vmatmul.mubr.f32.gmra.mrb[0].mxu0 %v1260
  %v1471 = vpop.f32.mrb[0].mxu0
  %v1472 = vadd.f32 0.0, %v1471
  %v1473 = vpop.f32.mrb[0].mxu0
  %1474 = vmatprep.mubr.f32.mxu0 0.0
  %1475 = vmatmul.mubr.f32.gmra.mrb[0].mxu0 %v1263
  %v1476 = vpop.f32.mrb[0].mxu0
  %v1477 = vadd.f32 0.0, %v1476
  %v1478 = vpop.f32.mrb[0].mxu0
  %1479 = vmatprep.mubr.f32.mxu0 0.0
  %1480 = vmatmul.mubr.f32.gmra.mrb[0].mxu0 %v1266
  %v1481 = vpop.f32.mrb[0].mxu0
  %v1482 = vadd.f32 0.0, %v1481
  %v1483 = vpop.f32.mrb[0].mxu0
  %1484 = vmatprep.mubr.f32.mxu0 0.0
  %1485 = vmatmul.mubr.f32.gmra.mrb[0].mxu0 %v1269
  %v1486 = vpop.f32.mrb[0].mxu0
  %v1487 = vadd.f32 0.0, %v1486
  %v1488 = vpop.f32.mrb[0].mxu0
  %1489 = vmatprep.mubr.f32.mxu0 0.0
  %1490 = vmatmul.mubr.f32.gmra.mrb[0].mxu0 %v1272
  %v1491 = vpop.f32.mrb[0].mxu0
  %v1492 = vadd.f32 0.0, %v1491
  %v1493 = vpop.f32.mrb[0].mxu0
  %1494 = vmatprep.mubr.f32.mxu0 0.0
  %1495 = vmatmul.mubr.f32.gmra.mrb[0].mxu0 %v1275
  %v1496 = vpop.f32.mrb[0].mxu0
  %v1497 = vadd.f32 0.0, %v1496
  %v1498 = vpop.f32.mrb[0].mxu0
  %1499 = vmatprep.mubr.f32.mxu0 0.0
  %1500 = vmatmul.mubr.f32.gmra.mrb[0].mxu0 %v1278
  %v1501 = vpop.f32.mrb[0].mxu0
  %v1502 = vadd.f32 0.0, %v1501
  %v1503 = vpop.f32.mrb[0].mxu0
  %1504 = vdwg.mxu0
  %v1505 = vadd.f32 %v1117, %v1347
  %v1506 = vadd.f32 %v1118, %v1352
  %v1507 = vadd.f32 %v1119, %v1357
  %v1508 = vadd.f32 %v1120, %v1362
  %v1509 = vadd.f32 %v1121, %v1367
  %v1510 = vadd.f32 %v1122, %v1372
  %v1511 = vadd.f32 %v1123, %v1377
  %v1512 = vadd.f32 %v1124, %v1382
  %v1513 = vadd.f32 %v1125, %v1387
  %v1514 = vadd.f32 %v1126, %v1392
  %v1515 = vadd.f32 %v1127, %v1397
  %v1516 = vadd.f32 %v1128, %v1402
  %v1517 = vadd.f32 %v1129, %v1407
  %v1518 = vadd.f32 %v1130, %v1412
  %v1519 = vadd.f32 %v1131, %v1417
  %v1520 = vadd.f32 %v1132, %v1422
  %v1521 = vadd.f32 %v1133, %v1427
  %v1522 = vadd.f32 %v1134, %v1432
  %v1523 = vadd.f32 %v1135, %v1437
  %v1524 = vadd.f32 %v1136, %v1442
  %v1525 = vadd.f32 %v1137, %v1447
  %v1526 = vadd.f32 %v1138, %v1452
  %v1527 = vadd.f32 %v1139, %v1457
  %v1528 = vadd.f32 %v1140, %v1462
  %v1529 = vadd.f32 %v1141, %v1467
  %v1530 = vadd.f32 %v1142, %v1472
  %v1531 = vadd.f32 %v1143, %v1477
  %v1532 = vadd.f32 %v1144, %v1482
  %v1533 = vadd.f32 %v1145, %v1487
  %v1534 = vadd.f32 %v1146, %v1492
  %v1535 = vadd.f32 %v1147, %v1497
  %v1536 = vadd.f32 %v1148, %v1502
  %v1537 = vld [vmem:[%s4] sm:$0x1]
  %v1539 = vlaneseq
  %v1540 = vshrl.u32 %v1539, 7
  %v1541 = vsub.s32 0, %v1540
  %v1542 = vrot.slane %v1537, %v1541
  %v1544 = vadd.f32 %v1505, %v1542
  %v1545 = vadd.f32 %v1506, %v1542
  %v1546 = vadd.f32 %v1507, %v1542
  %v1547 = vadd.f32 %v1508, %v1542
  %v1548 = vadd.f32 %v1509, %v1542
  %v1549 = vadd.f32 %v1510, %v1542
  %v1550 = vadd.f32 %v1511, %v1542
  %v1551 = vadd.f32 %v1512, %v1542
  %v1552 = vadd.f32 %v1513, %v1542
  %v1553 = vadd.f32 %v1514, %v1542
  %v1554 = vadd.f32 %v1515, %v1542
  %v1555 = vadd.f32 %v1516, %v1542
  %v1556 = vadd.f32 %v1517, %v1542
  %v1557 = vadd.f32 %v1518, %v1542
  %v1558 = vadd.f32 %v1519, %v1542
  %v1559 = vadd.f32 %v1520, %v1542
  %v1560 = vadd.f32 %v1521, %v1542
  %v1561 = vadd.f32 %v1522, %v1542
  %v1562 = vadd.f32 %v1523, %v1542
  %v1563 = vadd.f32 %v1524, %v1542
  %v1564 = vadd.f32 %v1525, %v1542
  %v1565 = vadd.f32 %v1526, %v1542
  %v1566 = vadd.f32 %v1527, %v1542
  %v1567 = vadd.f32 %v1528, %v1542
  %v1568 = vadd.f32 %v1529, %v1542
  %v1569 = vadd.f32 %v1530, %v1542
  %v1570 = vadd.f32 %v1531, %v1542
  %v1571 = vadd.f32 %v1532, %v1542
  %v1572 = vadd.f32 %v1533, %v1542
  %v1573 = vadd.f32 %v1534, %v1542
  %v1574 = vadd.f32 %v1535, %v1542
  %v1575 = vadd.f32 %v1536, %v1542
  %v1576 = vmax.f32 %v1544, 0.0
  %v1577 = vmax.f32 %v1545, 0.0
  %v1578 = vmax.f32 %v1546, 0.0
  %v1579 = vmax.f32 %v1547, 0.0
  %v1580 = vmax.f32 %v1548, 0.0
  %v1581 = vmax.f32 %v1549, 0.0
  %v1582 = vmax.f32 %v1550, 0.0
  %v1583 = vmax.f32 %v1551, 0.0
  %v1584 = vmax.f32 %v1552, 0.0
  %v1585 = vmax.f32 %v1553, 0.0
  %v1586 = vmax.f32 %v1554, 0.0
  %v1587 = vmax.f32 %v1555, 0.0
  %v1588 = vmax.f32 %v1556, 0.0
  %v1589 = vmax.f32 %v1557, 0.0
  %v1590 = vmax.f32 %v1558, 0.0
  %v1591 = vmax.f32 %v1559, 0.0
  %v1592 = vmax.f32 %v1560, 0.0
  %v1593 = vmax.f32 %v1561, 0.0
  %v1594 = vmax.f32 %v1562, 0.0
  %v1595 = vmax.f32 %v1563, 0.0
  %v1596 = vmax.f32 %v1564, 0.0
  %v1597 = vmax.f32 %v1565, 0.0
  %v1598 = vmax.f32 %v1566, 0.0
  %v1599 = vmax.f32 %v1567, 0.0
  %v1600 = vmax.f32 %v1568, 0.0
  %v1601 = vmax.f32 %v1569, 0.0
  %v1602 = vmax.f32 %v1570, 0.0
  %v1603 = vmax.f32 %v1571, 0.0
  %v1604 = vmax.f32 %v1572, 0.0
  %v1605 = vmax.f32 %v1573, 0.0
  %v1606 = vmax.f32 %v1574, 0.0
  %v1607 = vmax.f32 %v1575, 0.0
  %v1608 = vld [vmem:[%s9] sm:$0xff]
  %v1609 = vld [vmem:[%s9 + $0x8] sm:$0xff]
  %v1610 = vld [vmem:[%s9 + $0x10] sm:$0xff]
  %v1611 = vld [vmem:[%s9 + $0x18] sm:$0xff]
  %v1612 = vld [vmem:[%s9 + $0x20] sm:$0xff]
  %v1613 = vld [vmem:[%s9 + $0x28] sm:$0xff]
  %v1614 = vld [vmem:[%s9 + $0x30] sm:$0xff]
  %v1615 = vld [vmem:[%s9 + $0x38] sm:$0xff]
  %v1616 = vld [vmem:[%s10] sm:$0x1]
  %v1618 = vlaneseq
  %v1619 = vshrl.u32 %v1618, 7
  %v1620 = vsub.s32 0, %v1619
  %v1621 = vrot.slane %v1616, %v1620
  %vm1623 = vcmask 523264
  %v1625 = vsel %vm1623, %v1576, 0
  %v1628 = vsel %vm1623, %v1577, 0
  %v1631 = vsel %vm1623, %v1578, 0
  %v1634 = vsel %vm1623, %v1579, 0
  %v1637 = vsel %vm1623, %v1580, 0
  %v1640 = vsel %vm1623, %v1581, 0
  %v1643 = vsel %vm1623, %v1582, 0
  %v1646 = vsel %vm1623, %v1583, 0
  %v1649 = vsel %vm1623, %v1584, 0
  %v1652 = vsel %vm1623, %v1585, 0
  %v1655 = vsel %vm1623, %v1586, 0
  %v1658 = vsel %vm1623, %v1587, 0
  %v1661 = vsel %vm1623, %v1588, 0
  %v1664 = vsel %vm1623, %v1589, 0
  %v1667 = vsel %vm1623, %v1590, 0
  %v1670 = vsel %vm1623, %v1591, 0
  %v1673 = vsel %vm1623, %v1592, 0
  %v1676 = vsel %vm1623, %v1593, 0
  %v1679 = vsel %vm1623, %v1594, 0
  %v1682 = vsel %vm1623, %v1595, 0
  %v1685 = vsel %vm1623, %v1596, 0
  %v1688 = vsel %vm1623, %v1597, 0
  %v1691 = vsel %vm1623, %v1598, 0
  %v1694 = vsel %vm1623, %v1599, 0
  %v1697 = vsel %vm1623, %v1600, 0
  %v1700 = vsel %vm1623, %v1601, 0
  %v1703 = vsel %vm1623, %v1602, 0
  %v1706 = vsel %vm1623, %v1603, 0
  %v1709 = vsel %vm1623, %v1604, 0
  %v1712 = vsel %vm1623, %v1605, 0
  %v1715 = vsel %vm1623, %v1606, 0
  %v1718 = vsel %vm1623, %v1607, 0
  %1720 = vmatprep.subr.mxu0 0.0
  %1721 = vmatpush1.msra.mxu0 %v1608
  %1722 = vmatprep.subr.mxu0 0.0
  %1723 = vmatpush1.msra.mxu0 %v1609
  %1724 = vmatprep.subr.mxu0 0.0
  %1725 = vmatpush1.msra.mxu0 %v1610
  %1726 = vmatprep.subr.mxu0 0.0
  %1727 = vmatpush1.msra.mxu0 %v1611
  %1728 = vmatprep.subr.mxu0 0.0
  %1729 = vmatpush1.msra.mxu0 %v1612
  %1730 = vmatprep.subr.mxu0 0.0
  %1731 = vmatpush1.msra.mxu0 %v1613
  %1732 = vmatprep.subr.mxu0 0.0
  %1733 = vmatpush1.msra.mxu0 %v1614
  %1734 = vmatprep.subr.mxu0 0.0
  %1735 = vmatpush1.msra.mxu0 %v1615
  %1736 = vmatprep.subr.mxu0 0.0
  %1737 = vmatpush1.msra.mxu0 0.0
  %1738 = vmatprep.subr.mxu0 0.0
  %1739 = vmatpush1.msra.mxu0 0.0
  %1740 = vmatprep.subr.mxu0 0.0
  %1741 = vmatpush1.msra.mxu0 0.0
  %1742 = vmatprep.subr.mxu0 0.0
  %1743 = vmatpush1.msra.mxu0 0.0
  %1744 = vmatprep.subr.mxu0 0.0
  %1745 = vmatpush1.msra.mxu0 0.0
  %1746 = vmatprep.subr.mxu0 0.0
  %1747 = vmatpush1.msra.mxu0 0.0
  %1748 = vmatprep.subr.mxu0 0.0
  %1749 = vmatpush1.msra.mxu0 0.0
  %1750 = vmatprep.subr.mxu0 0.0
  %1751 = vmatpush1.msra.mxu0 0.0
  %1752 = vmatprep.subr.mxu0 0.0
  %1753 = vmatpush1.msra.mxu0 0.0
  %1754 = vmatprep.subr.mxu0 0.0
  %1755 = vmatpush1.msra.mxu0 0.0
  %1756 = vmatprep.subr.mxu0 0.0
  %1757 = vmatpush1.msra.mxu0 0.0
  %1758 = vmatprep.subr.mxu0 0.0
  %1759 = vmatpush1.msra.mxu0 0.0
  %1760 = vmatprep.subr.mxu0 0.0
  %1761 = vmatpush1.msra.mxu0 0.0
  %1762 = vmatprep.subr.mxu0 0.0
  %1763 = vmatpush1.msra.mxu0 0.0
  %1764 = vmatprep.subr.mxu0 0.0
  %1765 = vmatpush1.msra.mxu0 0.0
  %1766 = vmatprep.subr.mxu0 0.0
  %1767 = vmatpush1.msra.mxu0 0.0
  %1768 = vmatprep.subr.mxu0 0.0
  %1769 = vmatpush1.msra.mxu0 0.0
  %1770 = vmatprep.subr.mxu0 0.0
  %1771 = vmatpush1.msra.mxu0 0.0
  %1772 = vmatprep.subr.mxu0 0.0
  %1773 = vmatpush1.msra.mxu0 0.0
  %1774 = vmatprep.subr.mxu0 0.0
  %1775 = vmatpush1.msra.mxu0 0.0
  %1776 = vmatprep.subr.mxu0 0.0
  %1777 = vmatpush1.msra.mxu0 0.0
  %1778 = vmatprep.subr.mxu0 0.0
  %1779 = vmatpush1.msra.mxu0 0.0
  %1780 = vmatprep.subr.mxu0 0.0
  %1781 = vmatpush1.msra.mxu0 0.0
  %1782 = vmatprep.subr.mxu0 0.0
  %1783 = vmatpush1.msra.mxu0 0.0
  %1784 = vmatprep.mubr.f32.mxu0 0.0
  %1785 = vmatmul.mubr.f32.gmra.mrb[0].mxu0 %v1625
  %v1786 = vpop.f32.mrb[0].mxu0
  %v1787 = vadd.f32 %v1621, %v1786
  %v1788 = vpop.f32.mrb[0].mxu0
  %1789 = vmatprep.mubr.f32.mxu0 0.0
  %1790 = vmatmul.mubr.f32.gmra.mrb[0].mxu0 %v1628
  %v1791 = vpop.f32.mrb[0].mxu0
  %v1792 = vadd.f32 %v1621, %v1791
  %v1793 = vpop.f32.mrb[0].mxu0
  %1794 = vmatprep.mubr.f32.mxu0 0.0
  %1795 = vmatmul.mubr.f32.gmra.mrb[0].mxu0 %v1631
  %v1796 = vpop.f32.mrb[0].mxu0
  %v1797 = vadd.f32 %v1621, %v1796
  %v1798 = vpop.f32.mrb[0].mxu0
  %1799 = vmatprep.mubr.f32.mxu0 0.0
  %1800 = vmatmul.mubr.f32.gmra.mrb[0].mxu0 %v1634
  %v1801 = vpop.f32.mrb[0].mxu0
  %v1802 = vadd.f32 %v1621, %v1801
  %v1803 = vpop.f32.mrb[0].mxu0
  %1804 = vmatprep.mubr.f32.mxu0 0.0
  %1805 = vmatmul.mubr.f32.gmra.mrb[0].mxu0 %v1637
  %v1806 = vpop.f32.mrb[0].mxu0
  %v1807 = vadd.f32 %v1621, %v1806
  %v1808 = vpop.f32.mrb[0].mxu0
  %1809 = vmatprep.mubr.f32.mxu0 0.0
  %1810 = vmatmul.mubr.f32.gmra.mrb[0].mxu0 %v1640
  %v1811 = vpop.f32.mrb[0].mxu0
  %v1812 = vadd.f32 %v1621, %v1811
  %v1813 = vpop.f32.mrb[0].mxu0
  %1814 = vmatprep.mubr.f32.mxu0 0.0
  %1815 = vmatmul.mubr.f32.gmra.mrb[0].mxu0 %v1643
  %v1816 = vpop.f32.mrb[0].mxu0
  %v1817 = vadd.f32 %v1621, %v1816
  %v1818 = vpop.f32.mrb[0].mxu0
  %1819 = vmatprep.mubr.f32.mxu0 0.0
  %1820 = vmatmul.mubr.f32.gmra.mrb[0].mxu0 %v1646
  %v1821 = vpop.f32.mrb[0].mxu0
  %v1822 = vadd.f32 %v1621, %v1821
  %v1823 = vpop.f32.mrb[0].mxu0
  %1824 = vmatprep.mubr.f32.mxu0 0.0
  %1825 = vmatmul.mubr.f32.gmra.mrb[0].mxu0 %v1649
  %v1826 = vpop.f32.mrb[0].mxu0
  %v1827 = vadd.f32 %v1621, %v1826
  %v1828 = vpop.f32.mrb[0].mxu0
  %1829 = vmatprep.mubr.f32.mxu0 0.0
  %1830 = vmatmul.mubr.f32.gmra.mrb[0].mxu0 %v1652
  %v1831 = vpop.f32.mrb[0].mxu0
  %v1832 = vadd.f32 %v1621, %v1831
  %v1833 = vpop.f32.mrb[0].mxu0
  %1834 = vmatprep.mubr.f32.mxu0 0.0
  %1835 = vmatmul.mubr.f32.gmra.mrb[0].mxu0 %v1655
  %v1836 = vpop.f32.mrb[0].mxu0
  %v1837 = vadd.f32 %v1621, %v1836
  %v1838 = vpop.f32.mrb[0].mxu0
  %1839 = vmatprep.mubr.f32.mxu0 0.0
  %1840 = vmatmul.mubr.f32.gmra.mrb[0].mxu0 %v1658
  %v1841 = vpop.f32.mrb[0].mxu0
  %v1842 = vadd.f32 %v1621, %v1841
  %v1843 = vpop.f32.mrb[0].mxu0
  %1844 = vmatprep.mubr.f32.mxu0 0.0
  %1845 = vmatmul.mubr.f32.gmra.mrb[0].mxu0 %v1661
  %v1846 = vpop.f32.mrb[0].mxu0
  %v1847 = vadd.f32 %v1621, %v1846
  %v1848 = vpop.f32.mrb[0].mxu0
  %1849 = vmatprep.mubr.f32.mxu0 0.0
  %1850 = vmatmul.mubr.f32.gmra.mrb[0].mxu0 %v1664
  %v1851 = vpop.f32.mrb[0].mxu0
  %v1852 = vadd.f32 %v1621, %v1851
  %v1853 = vpop.f32.mrb[0].mxu0
  %1854 = vmatprep.mubr.f32.mxu0 0.0
  %1855 = vmatmul.mubr.f32.gmra.mrb[0].mxu0 %v1667
  %v1856 = vpop.f32.mrb[0].mxu0
  %v1857 = vadd.f32 %v1621, %v1856
  %v1858 = vpop.f32.mrb[0].mxu0
  %1859 = vmatprep.mubr.f32.mxu0 0.0
  %1860 = vmatmul.mubr.f32.gmra.mrb[0].mxu0 %v1670
  %v1861 = vpop.f32.mrb[0].mxu0
  %v1862 = vadd.f32 %v1621, %v1861
  %v1863 = vpop.f32.mrb[0].mxu0
  %1864 = vmatprep.mubr.f32.mxu0 0.0
  %1865 = vmatmul.mubr.f32.gmra.mrb[0].mxu0 %v1673
  %v1866 = vpop.f32.mrb[0].mxu0
  %v1867 = vadd.f32 %v1621, %v1866
  %v1868 = vpop.f32.mrb[0].mxu0
  %1869 = vmatprep.mubr.f32.mxu0 0.0
  %1870 = vmatmul.mubr.f32.gmra.mrb[0].mxu0 %v1676
  %v1871 = vpop.f32.mrb[0].mxu0
  %v1872 = vadd.f32 %v1621, %v1871
  %v1873 = vpop.f32.mrb[0].mxu0
  %1874 = vmatprep.mubr.f32.mxu0 0.0
  %1875 = vmatmul.mubr.f32.gmra.mrb[0].mxu0 %v1679
  %v1876 = vpop.f32.mrb[0].mxu0
  %v1877 = vadd.f32 %v1621, %v1876
  %v1878 = vpop.f32.mrb[0].mxu0
  %1879 = vmatprep.mubr.f32.mxu0 0.0
  %1880 = vmatmul.mubr.f32.gmra.mrb[0].mxu0 %v1682
  %v1881 = vpop.f32.mrb[0].mxu0
  %v1882 = vadd.f32 %v1621, %v1881
  %v1883 = vpop.f32.mrb[0].mxu0
  %1884 = vmatprep.mubr.f32.mxu0 0.0
  %1885 = vmatmul.mubr.f32.gmra.mrb[0].mxu0 %v1685
  %v1886 = vpop.f32.mrb[0].mxu0
  %v1887 = vadd.f32 %v1621, %v1886
  %v1888 = vpop.f32.mrb[0].mxu0
  %1889 = vmatprep.mubr.f32.mxu0 0.0
  %1890 = vmatmul.mubr.f32.gmra.mrb[0].mxu0 %v1688
  %v1891 = vpop.f32.mrb[0].mxu0
  %v1892 = vadd.f32 %v1621, %v1891
  %v1893 = vpop.f32.mrb[0].mxu0
  %1894 = vmatprep.mubr.f32.mxu0 0.0
  %1895 = vmatmul.mubr.f32.gmra.mrb[0].mxu0 %v1691
  %v1896 = vpop.f32.mrb[0].mxu0
  %v1897 = vadd.f32 %v1621, %v1896
  %v1898 = vpop.f32.mrb[0].mxu0
  %1899 = vmatprep.mubr.f32.mxu0 0.0
  %1900 = vmatmul.mubr.f32.gmra.mrb[0].mxu0 %v1694
  %v1901 = vpop.f32.mrb[0].mxu0
  %v1902 = vadd.f32 %v1621, %v1901
  %v1903 = vpop.f32.mrb[0].mxu0
  %1904 = vmatprep.mubr.f32.mxu0 0.0
  %1905 = vmatmul.mubr.f32.gmra.mrb[0].mxu0 %v1697
  %v1906 = vpop.f32.mrb[0].mxu0
  %v1907 = vadd.f32 %v1621, %v1906
  %v1908 = vpop.f32.mrb[0].mxu0
  %1909 = vmatprep.mubr.f32.mxu0 0.0
  %1910 = vmatmul.mubr.f32.gmra.mrb[0].mxu0 %v1700
  %v1911 = vpop.f32.mrb[0].mxu0
  %v1912 = vadd.f32 %v1621, %v1911
  %v1913 = vpop.f32.mrb[0].mxu0
  %1914 = vmatprep.mubr.f32.mxu0 0.0
  %1915 = vmatmul.mubr.f32.gmra.mrb[0].mxu0 %v1703
  %v1916 = vpop.f32.mrb[0].mxu0
  %v1917 = vadd.f32 %v1621, %v1916
  %v1918 = vpop.f32.mrb[0].mxu0
  %1919 = vmatprep.mubr.f32.mxu0 0.0
  %1920 = vmatmul.mubr.f32.gmra.mrb[0].mxu0 %v1706
  %v1921 = vpop.f32.mrb[0].mxu0
  %v1922 = vadd.f32 %v1621, %v1921
  %v1923 = vpop.f32.mrb[0].mxu0
  %1924 = vmatprep.mubr.f32.mxu0 0.0
  %1925 = vmatmul.mubr.f32.gmra.mrb[0].mxu0 %v1709
  %v1926 = vpop.f32.mrb[0].mxu0
  %v1927 = vadd.f32 %v1621, %v1926
  %v1928 = vpop.f32.mrb[0].mxu0
  %1929 = vmatprep.mubr.f32.mxu0 0.0
  %1930 = vmatmul.mubr.f32.gmra.mrb[0].mxu0 %v1712
  %v1931 = vpop.f32.mrb[0].mxu0
  %v1932 = vadd.f32 %v1621, %v1931
  %v1933 = vpop.f32.mrb[0].mxu0
  %1934 = vmatprep.mubr.f32.mxu0 0.0
  %1935 = vmatmul.mubr.f32.gmra.mrb[0].mxu0 %v1715
  %v1936 = vpop.f32.mrb[0].mxu0
  %v1937 = vadd.f32 %v1621, %v1936
  %v1938 = vpop.f32.mrb[0].mxu0
  %1939 = vmatprep.mubr.f32.mxu0 0.0
  %1940 = vmatmul.mubr.f32.gmra.mrb[0].mxu0 %v1718
  %v1941 = vpop.f32.mrb[0].mxu0
  %v1942 = vadd.f32 %v1621, %v1941
  %v1943 = vpop.f32.mrb[0].mxu0
  %1944 = vdwg.mxu0
  %v1945 = vmax.f32 %v1787, 0.0
  %v1946 = vmax.f32 %v1792, 0.0
  %v1947 = vmax.f32 %v1797, 0.0
  %v1948 = vmax.f32 %v1802, 0.0
  %v1949 = vmax.f32 %v1807, 0.0
  %v1950 = vmax.f32 %v1812, 0.0
  %v1951 = vmax.f32 %v1817, 0.0
  %v1952 = vmax.f32 %v1822, 0.0
  %v1953 = vmax.f32 %v1827, 0.0
  %v1954 = vmax.f32 %v1832, 0.0
  %v1955 = vmax.f32 %v1837, 0.0
  %v1956 = vmax.f32 %v1842, 0.0
  %v1957 = vmax.f32 %v1847, 0.0
  %v1958 = vmax.f32 %v1852, 0.0
  %v1959 = vmax.f32 %v1857, 0.0
  %v1960 = vmax.f32 %v1862, 0.0
  %v1961 = vmax.f32 %v1867, 0.0
  %v1962 = vmax.f32 %v1872, 0.0
  %v1963 = vmax.f32 %v1877, 0.0
  %v1964 = vmax.f32 %v1882, 0.0
  %v1965 = vmax.f32 %v1887, 0.0
  %v1966 = vmax.f32 %v1892, 0.0
  %v1967 = vmax.f32 %v1897, 0.0
  %v1968 = vmax.f32 %v1902, 0.0
  %v1969 = vmax.f32 %v1907, 0.0
  %v1970 = vmax.f32 %v1912, 0.0
  %v1971 = vmax.f32 %v1917, 0.0
  %v1972 = vmax.f32 %v1922, 0.0
  %v1973 = vmax.f32 %v1927, 0.0
  %v1974 = vmax.f32 %v1932, 0.0
  %v1975 = vmax.f32 %v1937, 0.0
  %v1976 = vmax.f32 %v1942, 0.0
  %v1977 = vld [vmem:[%s11] sm:$0xff]
  %v1978 = vld [vmem:[%s11 + $0x8] sm:$0xff]
  %v1979 = vld [vmem:[%s11 + $0x10] sm:$0xff]
  %v1980 = vld [vmem:[%s11 + $0x18] sm:$0xff]
  %v1981 = vld [vmem:[%s11 + $0x20] sm:$0xff]
  %v1982 = vld [vmem:[%s11 + $0x28] sm:$0xff]
  %v1983 = vld [vmem:[%s11 + $0x30] sm:$0xff]
  %v1984 = vld [vmem:[%s11 + $0x38] sm:$0xff]
  %v1985 = vld [vmem:[%s12] sm:$0x1]
  %v1987 = vlaneseq
  %v1988 = vshrl.u32 %v1987, 7
  %v1989 = vsub.s32 0, %v1988
  %v1990 = vrot.slane %v1985, %v1989
  %v1993 = vsel %vm1623, %v1945, 0
  %v1996 = vsel %vm1623, %v1946, 0
  %v1999 = vsel %vm1623, %v1947, 0
  %v2002 = vsel %vm1623, %v1948, 0
  %v2005 = vsel %vm1623, %v1949, 0
  %v2008 = vsel %vm1623, %v1950, 0
  %v2011 = vsel %vm1623, %v1951, 0
  %v2014 = vsel %vm1623, %v1952, 0
  %v2017 = vsel %vm1623, %v1953, 0
  %v2020 = vsel %vm1623, %v1954, 0
  %v2023 = vsel %vm1623, %v1955, 0
  %v2026 = vsel %vm1623, %v1956, 0
  %v2029 = vsel %vm1623, %v1957, 0
  %v2032 = vsel %vm1623, %v1958, 0
  %v2035 = vsel %vm1623, %v1959, 0
  %v2038 = vsel %vm1623, %v1960, 0
  %v2041 = vsel %vm1623, %v1961, 0
  %v2044 = vsel %vm1623, %v1962, 0
  %v2047 = vsel %vm1623, %v1963, 0
  %v2050 = vsel %vm1623, %v1964, 0
  %v2053 = vsel %vm1623, %v1965, 0
  %v2056 = vsel %vm1623, %v1966, 0
  %v2059 = vsel %vm1623, %v1967, 0
  %v2062 = vsel %vm1623, %v1968, 0
  %v2065 = vsel %vm1623, %v1969, 0
  %v2068 = vsel %vm1623, %v1970, 0
  %v2071 = vsel %vm1623, %v1971, 0
  %v2074 = vsel %vm1623, %v1972, 0
  %v2077 = vsel %vm1623, %v1973, 0
  %v2080 = vsel %vm1623, %v1974, 0
  %v2083 = vsel %vm1623, %v1975, 0
  %v2086 = vsel %vm1623, %v1976, 0
  %2088 = vmatprep.subr.mxu0 0.0
  %2089 = vmatpush1.msra.mxu0 %v1977
  %2090 = vmatprep.subr.mxu0 0.0
  %2091 = vmatpush1.msra.mxu0 %v1978
  %2092 = vmatprep.subr.mxu0 0.0
  %2093 = vmatpush1.msra.mxu0 %v1979
  %2094 = vmatprep.subr.mxu0 0.0
  %2095 = vmatpush1.msra.mxu0 %v1980
  %2096 = vmatprep.subr.mxu0 0.0
  %2097 = vmatpush1.msra.mxu0 %v1981
  %2098 = vmatprep.subr.mxu0 0.0
  %2099 = vmatpush1.msra.mxu0 %v1982
  %2100 = vmatprep.subr.mxu0 0.0
  %2101 = vmatpush1.msra.mxu0 %v1983
  %2102 = vmatprep.subr.mxu0 0.0
  %2103 = vmatpush1.msra.mxu0 %v1984
  %2104 = vmatprep.subr.mxu0 0.0
  %2105 = vmatpush1.msra.mxu0 0.0
  %2106 = vmatprep.subr.mxu0 0.0
  %2107 = vmatpush1.msra.mxu0 0.0
  %2108 = vmatprep.subr.mxu0 0.0
  %2109 = vmatpush1.msra.mxu0 0.0
  %2110 = vmatprep.subr.mxu0 0.0
  %2111 = vmatpush1.msra.mxu0 0.0
  %2112 = vmatprep.subr.mxu0 0.0
  %2113 = vmatpush1.msra.mxu0 0.0
  %2114 = vmatprep.subr.mxu0 0.0
  %2115 = vmatpush1.msra.mxu0 0.0
  %2116 = vmatprep.subr.mxu0 0.0
  %2117 = vmatpush1.msra.mxu0 0.0
  %2118 = vmatprep.subr.mxu0 0.0
  %2119 = vmatpush1.msra.mxu0 0.0
  %2120 = vmatprep.subr.mxu0 0.0
  %2121 = vmatpush1.msra.mxu0 0.0
  %2122 = vmatprep.subr.mxu0 0.0
  %2123 = vmatpush1.msra.mxu0 0.0
  %2124 = vmatprep.subr.mxu0 0.0
  %2125 = vmatpush1.msra.mxu0 0.0
  %2126 = vmatprep.subr.mxu0 0.0
  %2127 = vmatpush1.msra.mxu0 0.0
  %2128 = vmatprep.subr.mxu0 0.0
  %2129 = vmatpush1.msra.mxu0 0.0
  %2130 = vmatprep.subr.mxu0 0.0
  %2131 = vmatpush1.msra.mxu0 0.0
  %2132 = vmatprep.subr.mxu0 0.0
  %2133 = vmatpush1.msra.mxu0 0.0
  %2134 = vmatprep.subr.mxu0 0.0
  %2135 = vmatpush1.msra.mxu0 0.0
  %2136 = vmatprep.subr.mxu0 0.0
  %2137 = vmatpush1.msra.mxu0 0.0
  %2138 = vmatprep.subr.mxu0 0.0
  %2139 = vmatpush1.msra.mxu0 0.0
  %2140 = vmatprep.subr.mxu0 0.0
  %2141 = vmatpush1.msra.mxu0 0.0
  %2142 = vmatprep.subr.mxu0 0.0
  %2143 = vmatpush1.msra.mxu0 0.0
  %2144 = vmatprep.subr.mxu0 0.0
  %2145 = vmatpush1.msra.mxu0 0.0
  %2146 = vmatprep.subr.mxu0 0.0
  %2147 = vmatpush1.msra.mxu0 0.0
  %2148 = vmatprep.subr.mxu0 0.0
  %2149 = vmatpush1.msra.mxu0 0.0
  %2150 = vmatprep.subr.mxu0 0.0
  %2151 = vmatpush1.msra.mxu0 0.0
  %2152 = vmatprep.mubr.f32.mxu0 0.0
  %2153 = vmatmul.mubr.f32.gmra.mrb[0].mxu0 %v1993
  %v2154 = vpop.f32.mrb[0].mxu0
  %v2155 = vadd.f32 %v1990, %v2154
  %v2156 = vpop.f32.mrb[0].mxu0
  %2157 = vmatprep.mubr.f32.mxu0 0.0
  %2158 = vmatmul.mubr.f32.gmra.mrb[0].mxu0 %v1996
  %v2159 = vpop.f32.mrb[0].mxu0
  %v2160 = vadd.f32 %v1990, %v2159
  %v2161 = vpop.f32.mrb[0].mxu0
  %2162 = vmatprep.mubr.f32.mxu0 0.0
  %2163 = vmatmul.mubr.f32.gmra.mrb[0].mxu0 %v1999
  %v2164 = vpop.f32.mrb[0].mxu0
  %v2165 = vadd.f32 %v1990, %v2164
  %v2166 = vpop.f32.mrb[0].mxu0
  %2167 = vmatprep.mubr.f32.mxu0 0.0
  %2168 = vmatmul.mubr.f32.gmra.mrb[0].mxu0 %v2002
  %v2169 = vpop.f32.mrb[0].mxu0
  %v2170 = vadd.f32 %v1990, %v2169
  %v2171 = vpop.f32.mrb[0].mxu0
  %2172 = vmatprep.mubr.f32.mxu0 0.0
  %2173 = vmatmul.mubr.f32.gmra.mrb[0].mxu0 %v2005
  %v2174 = vpop.f32.mrb[0].mxu0
  %v2175 = vadd.f32 %v1990, %v2174
  %v2176 = vpop.f32.mrb[0].mxu0
  %2177 = vmatprep.mubr.f32.mxu0 0.0
  %2178 = vmatmul.mubr.f32.gmra.mrb[0].mxu0 %v2008
  %v2179 = vpop.f32.mrb[0].mxu0
  %v2180 = vadd.f32 %v1990, %v2179
  %v2181 = vpop.f32.mrb[0].mxu0
  %2182 = vmatprep.mubr.f32.mxu0 0.0
  %2183 = vmatmul.mubr.f32.gmra.mrb[0].mxu0 %v2011
  %v2184 = vpop.f32.mrb[0].mxu0
  %v2185 = vadd.f32 %v1990, %v2184
  %v2186 = vpop.f32.mrb[0].mxu0
  %2187 = vmatprep.mubr.f32.mxu0 0.0
  %2188 = vmatmul.mubr.f32.gmra.mrb[0].mxu0 %v2014
  %v2189 = vpop.f32.mrb[0].mxu0
  %v2190 = vadd.f32 %v1990, %v2189
  %v2191 = vpop.f32.mrb[0].mxu0
  %2192 = vmatprep.mubr.f32.mxu0 0.0
  %2193 = vmatmul.mubr.f32.gmra.mrb[0].mxu0 %v2017
  %v2194 = vpop.f32.mrb[0].mxu0
  %v2195 = vadd.f32 %v1990, %v2194
  %v2196 = vpop.f32.mrb[0].mxu0
  %2197 = vmatprep.mubr.f32.mxu0 0.0
  %2198 = vmatmul.mubr.f32.gmra.mrb[0].mxu0 %v2020
  %v2199 = vpop.f32.mrb[0].mxu0
  %v2200 = vadd.f32 %v1990, %v2199
  %v2201 = vpop.f32.mrb[0].mxu0
  %2202 = vmatprep.mubr.f32.mxu0 0.0
  %2203 = vmatmul.mubr.f32.gmra.mrb[0].mxu0 %v2023
  %v2204 = vpop.f32.mrb[0].mxu0
  %v2205 = vadd.f32 %v1990, %v2204
  %v2206 = vpop.f32.mrb[0].mxu0
  %2207 = vmatprep.mubr.f32.mxu0 0.0
  %2208 = vmatmul.mubr.f32.gmra.mrb[0].mxu0 %v2026
  %v2209 = vpop.f32.mrb[0].mxu0
  %v2210 = vadd.f32 %v1990, %v2209
  %v2211 = vpop.f32.mrb[0].mxu0
  %2212 = vmatprep.mubr.f32.mxu0 0.0
  %2213 = vmatmul.mubr.f32.gmra.mrb[0].mxu0 %v2029
  %v2214 = vpop.f32.mrb[0].mxu0
  %v2215 = vadd.f32 %v1990, %v2214
  %v2216 = vpop.f32.mrb[0].mxu0
  %2217 = vmatprep.mubr.f32.mxu0 0.0
  %2218 = vmatmul.mubr.f32.gmra.mrb[0].mxu0 %v2032
  %v2219 = vpop.f32.mrb[0].mxu0
  %v2220 = vadd.f32 %v1990, %v2219
  %v2221 = vpop.f32.mrb[0].mxu0
  %2222 = vmatprep.mubr.f32.mxu0 0.0
  %2223 = vmatmul.mubr.f32.gmra.mrb[0].mxu0 %v2035
  %v2224 = vpop.f32.mrb[0].mxu0
  %v2225 = vadd.f32 %v1990, %v2224
  %v2226 = vpop.f32.mrb[0].mxu0
  %2227 = vmatprep.mubr.f32.mxu0 0.0
  %2228 = vmatmul.mubr.f32.gmra.mrb[0].mxu0 %v2038
  %v2229 = vpop.f32.mrb[0].mxu0
  %v2230 = vadd.f32 %v1990, %v2229
  %v2231 = vpop.f32.mrb[0].mxu0
  %2232 = vmatprep.mubr.f32.mxu0 0.0
  %2233 = vmatmul.mubr.f32.gmra.mrb[0].mxu0 %v2041
  %v2234 = vpop.f32.mrb[0].mxu0
  %v2235 = vadd.f32 %v1990, %v2234
  %v2236 = vpop.f32.mrb[0].mxu0
  %2237 = vmatprep.mubr.f32.mxu0 0.0
  %2238 = vmatmul.mubr.f32.gmra.mrb[0].mxu0 %v2044
  %v2239 = vpop.f32.mrb[0].mxu0
  %v2240 = vadd.f32 %v1990, %v2239
  %v2241 = vpop.f32.mrb[0].mxu0
  %2242 = vmatprep.mubr.f32.mxu0 0.0
  %2243 = vmatmul.mubr.f32.gmra.mrb[0].mxu0 %v2047
  %v2244 = vpop.f32.mrb[0].mxu0
  %v2245 = vadd.f32 %v1990, %v2244
  %v2246 = vpop.f32.mrb[0].mxu0
  %2247 = vmatprep.mubr.f32.mxu0 0.0
  %2248 = vmatmul.mubr.f32.gmra.mrb[0].mxu0 %v2050
  %v2249 = vpop.f32.mrb[0].mxu0
  %v2250 = vadd.f32 %v1990, %v2249
  %v2251 = vpop.f32.mrb[0].mxu0
  %2252 = vmatprep.mubr.f32.mxu0 0.0
  %2253 = vmatmul.mubr.f32.gmra.mrb[0].mxu0 %v2053
  %v2254 = vpop.f32.mrb[0].mxu0
  %v2255 = vadd.f32 %v1990, %v2254
  %v2256 = vpop.f32.mrb[0].mxu0
  %2257 = vmatprep.mubr.f32.mxu0 0.0
  %2258 = vmatmul.mubr.f32.gmra.mrb[0].mxu0 %v2056
  %v2259 = vpop.f32.mrb[0].mxu0
  %v2260 = vadd.f32 %v1990, %v2259
  %v2261 = vpop.f32.mrb[0].mxu0
  %2262 = vmatprep.mubr.f32.mxu0 0.0
  %2263 = vmatmul.mubr.f32.gmra.mrb[0].mxu0 %v2059
  %v2264 = vpop.f32.mrb[0].mxu0
  %v2265 = vadd.f32 %v1990, %v2264
  %v2266 = vpop.f32.mrb[0].mxu0
  %2267 = vmatprep.mubr.f32.mxu0 0.0
  %2268 = vmatmul.mubr.f32.gmra.mrb[0].mxu0 %v2062
  %v2269 = vpop.f32.mrb[0].mxu0
  %v2270 = vadd.f32 %v1990, %v2269
  %v2271 = vpop.f32.mrb[0].mxu0
  %2272 = vmatprep.mubr.f32.mxu0 0.0
  %2273 = vmatmul.mubr.f32.gmra.mrb[0].mxu0 %v2065
  %v2274 = vpop.f32.mrb[0].mxu0
  %v2275 = vadd.f32 %v1990, %v2274
  %v2276 = vpop.f32.mrb[0].mxu0
  %2277 = vmatprep.mubr.f32.mxu0 0.0
  %2278 = vmatmul.mubr.f32.gmra.mrb[0].mxu0 %v2068
  %v2279 = vpop.f32.mrb[0].mxu0
  %v2280 = vadd.f32 %v1990, %v2279
  %v2281 = vpop.f32.mrb[0].mxu0
  %2282 = vmatprep.mubr.f32.mxu0 0.0
  %2283 = vmatmul.mubr.f32.gmra.mrb[0].mxu0 %v2071
  %v2284 = vpop.f32.mrb[0].mxu0
  %v2285 = vadd.f32 %v1990, %v2284
  %v2286 = vpop.f32.mrb[0].mxu0
  %2287 = vmatprep.mubr.f32.mxu0 0.0
  %2288 = vmatmul.mubr.f32.gmra.mrb[0].mxu0 %v2074
  %v2289 = vpop.f32.mrb[0].mxu0
  %v2290 = vadd.f32 %v1990, %v2289
  %v2291 = vpop.f32.mrb[0].mxu0
  %2292 = vmatprep.mubr.f32.mxu0 0.0
  %2293 = vmatmul.mubr.f32.gmra.mrb[0].mxu0 %v2077
  %v2294 = vpop.f32.mrb[0].mxu0
  %v2295 = vadd.f32 %v1990, %v2294
  %v2296 = vpop.f32.mrb[0].mxu0
  %2297 = vmatprep.mubr.f32.mxu0 0.0
  %2298 = vmatmul.mubr.f32.gmra.mrb[0].mxu0 %v2080
  %v2299 = vpop.f32.mrb[0].mxu0
  %v2300 = vadd.f32 %v1990, %v2299
  %v2301 = vpop.f32.mrb[0].mxu0
  %2302 = vmatprep.mubr.f32.mxu0 0.0
  %2303 = vmatmul.mubr.f32.gmra.mrb[0].mxu0 %v2083
  %v2304 = vpop.f32.mrb[0].mxu0
  %v2305 = vadd.f32 %v1990, %v2304
  %v2306 = vpop.f32.mrb[0].mxu0
  %2307 = vmatprep.mubr.f32.mxu0 0.0
  %2308 = vmatmul.mubr.f32.gmra.mrb[0].mxu0 %v2086
  %v2309 = vpop.f32.mrb[0].mxu0
  %v2310 = vadd.f32 %v1990, %v2309
  %v2311 = vpop.f32.mrb[0].mxu0
  %2312 = vdwg.mxu0
  %v2313 = vtanh.pop %v2155
  %v2314 = vtanh.pop %v2160
  %v2315 = vtanh.pop %v2165
  %v2316 = vtanh.pop %v2170
  %v2317 = vtanh.pop %v2175
  %v2318 = vtanh.pop %v2180
  %v2319 = vtanh.pop %v2185
  %v2320 = vtanh.pop %v2190
  %v2321 = vtanh.pop %v2195
  %v2322 = vtanh.pop %v2200
  %v2323 = vtanh.pop %v2205
  %v2324 = vtanh.pop %v2210
  %v2325 = vtanh.pop %v2215
  %v2326 = vtanh.pop %v2220
  %v2327 = vtanh.pop %v2225
  %v2328 = vtanh.pop %v2230
  %v2329 = vtanh.pop %v2235
  %v2330 = vtanh.pop %v2240
  %v2331 = vtanh.pop %v2245
  %v2332 = vtanh.pop %v2250
  %v2333 = vtanh.pop %v2255
  %v2334 = vtanh.pop %v2260
  %v2335 = vtanh.pop %v2265
  %v2336 = vtanh.pop %v2270
  %v2337 = vtanh.pop %v2275
  %v2338 = vtanh.pop %v2280
  %v2339 = vtanh.pop %v2285
  %v2340 = vtanh.pop %v2290
  %v2341 = vtanh.pop %v2295
  %v2342 = vtanh.pop %v2300
  %v2343 = vtanh.pop %v2305
  %v2344 = vtanh.pop %v2310
  %2345 = vst.msk [vmem:[%s13] sm:$0xff] %vm110, %v2313
  %2346 = vst.msk [vmem:[%s13 + $0x8] sm:$0xff] %vm110, %v2314
  %2347 = vst.msk [vmem:[%s13 + $0x10] sm:$0xff] %vm110, %v2315
  %2348 = vst.msk [vmem:[%s13 + $0x18] sm:$0xff] %vm110, %v2316
  %2349 = vst.msk [vmem:[%s13 + $0x20] sm:$0xff] %vm110, %v2317
  %2350 = vst.msk [vmem:[%s13 + $0x28] sm:$0xff] %vm110, %v2318
  %2351 = vst.msk [vmem:[%s13 + $0x30] sm:$0xff] %vm110, %v2319
  %2352 = vst.msk [vmem:[%s13 + $0x38] sm:$0xff] %vm110, %v2320
  %2353 = vst.msk [vmem:[%s13 + $0x40] sm:$0xff] %vm110, %v2321
  %2354 = vst.msk [vmem:[%s13 + $0x48] sm:$0xff] %vm110, %v2322
  %2355 = vst.msk [vmem:[%s13 + $0x50] sm:$0xff] %vm110, %v2323
  %2356 = vst.msk [vmem:[%s13 + $0x58] sm:$0xff] %vm110, %v2324
  %2357 = vst.msk [vmem:[%s13 + $0x60] sm:$0xff] %vm110, %v2325
  %2358 = vst.msk [vmem:[%s13 + $0x68] sm:$0xff] %vm110, %v2326
  %2359 = vst.msk [vmem:[%s13 + $0x70] sm:$0xff] %vm110, %v2327
  %2360 = vst.msk [vmem:[%s13 + $0x78] sm:$0xff] %vm110, %v2328
  %2361 = vst.msk [vmem:[%s13 + $0x80] sm:$0xff] %vm110, %v2329
  %2362 = vst.msk [vmem:[%s13 + $0x88] sm:$0xff] %vm110, %v2330
  %2363 = vst.msk [vmem:[%s13 + $0x90] sm:$0xff] %vm110, %v2331
  %2364 = vst.msk [vmem:[%s13 + $0x98] sm:$0xff] %vm110, %v2332
  %2365 = vst.msk [vmem:[%s13 + $0xa0] sm:$0xff] %vm110, %v2333
  %2366 = vst.msk [vmem:[%s13 + $0xa8] sm:$0xff] %vm110, %v2334
  %2367 = vst.msk [vmem:[%s13 + $0xb0] sm:$0xff] %vm110, %v2335
  %2368 = vst.msk [vmem:[%s13 + $0xb8] sm:$0xff] %vm110, %v2336
  %2369 = vst.msk [vmem:[%s13 + $0xc0] sm:$0xff] %vm110, %v2337
  %2370 = vst.msk [vmem:[%s13 + $0xc8] sm:$0xff] %vm110, %v2338
  %2371 = vst.msk [vmem:[%s13 + $0xd0] sm:$0xff] %vm110, %v2339
  %2372 = vst.msk [vmem:[%s13 + $0xd8] sm:$0xff] %vm110, %v2340
  %2373 = vst.msk [vmem:[%s13 + $0xe0] sm:$0xff] %vm110, %v2341
  %2374 = vst.msk [vmem:[%s13 + $0xe8] sm:$0xff] %vm110, %v2342
  %2375 = vst.msk [vmem:[%s13 + $0xf0] sm:$0xff] %vm110, %v2343
  %2376 = vst.msk [vmem:[%s13 + $0xf8] sm:$0xff] %vm110, %v2344
  // Predicated region
  $region54: #{_run_mlp.1} parent=0 // pred_check
    _
  $region55: #{_run_mlp.1} parent=0 // pred_check_branch
    %2378 = sbr.rel (0) target = $region57
  $region56: #{_run_mlp.1} parent=0 // pred_region
    _
  $region57: #{_run_mlp.1} parent=0 // pred_fallthru
    _
  // Predicated region
  $region58: #{_run_mlp.1} parent=0 // pred_check
    _
  $region59: #{_run_mlp.1} parent=0 // pred_check_branch
    %2380 = sbr.rel (0) target = $region61
  $region60: #{_run_mlp.1} parent=0 // pred_region
    _
  $region61: #{_run_mlp.1} parent=0 // pred_fallthru
    _

</llo_original>
